<compile_context>
chip_gen: v5e
topology: v5e:2x2
jax: 0.10.0
libtpu: 0.0.40
codegen_flags: <defaults>
</compile_context>

<pallas_src>
import jax
import jax.numpy as jnp
from jax import lax
from jax.experimental import pallas as pl
from jax.experimental.pallas import tpu as pltpu


def _round_up(x, m):
    return (x + m - 1) // m * m


_ACT = {"ELU": "elu", "Sigmoid": "sigmoid", "Identity": "identity"}


# ----------------------------------------------------------------------------
# Fused gated matmul kernel (transposed orientation):
#   acc[2*Cp, tm] = Wcat[2*Cp, Kp] @ Pt[Kp, tm]   (bf16 operands, f32 acc)
#   out[Cp, tm]   = act( sigmoid(acc[Cp:] + bg) * (acc[:Cp] + b) )
# ----------------------------------------------------------------------------
def _make_gated_kernel(activation, cp):
    def kernel(w_ref, b_ref, p_ref, o_ref):
        acc = jnp.dot(w_ref[...], p_ref[...],
                      preferred_element_type=jnp.float32)
        acc = acc + b_ref[...]                 # bias folded into the epilogue
        y = acc[:cp, :]                        # conv branch
        g = jax.nn.sigmoid(acc[cp:, :])        # gate branch
        z = g * y
        if activation == "elu":
            # clamped exp: exact for z <= 0, no inf in the unselected branch
            z = jnp.where(z > 0, z, jnp.exp(jnp.minimum(z, 0.0)) - 1.0)
        elif activation == "sigmoid":
            z = jax.nn.sigmoid(z)
        # "identity": leave as is
        o_ref[...] = z.astype(o_ref.dtype)

    return kernel


def gated_matmul_t(pt_bf16, wt, b_cat, activation):
    """pt_bf16: [K, M] bf16, wt: [2*Cp, Kp] bf16, b_cat: [2*Cp, 1] f32 -> [Cp, Mp] f32."""
    k, m = pt_bf16.shape
    n2, kp = wt.shape
    assert kp >= k and n2 % 2 == 0
    cp = n2 // 2
    mp = _round_up(m, 128)
    if mp <= 2048:                     # fewer, larger grid steps (v6e/v7x advice)
        tm = mp
    else:
        tm = 1024
        mp = _round_up(mp, tm)
    ptp = jnp.pad(pt_bf16, ((0, kp - k), (0, mp - m)))   # stays bf16

    cost = pl.CostEstimate(
        flops=2 * n2 * kp * mp,
        transcendentals=2 * cp * mp,
        bytes_accessed=n2 * kp * 2 + kp * mp * 2 + n2 * 4 + cp * mp * 4)

    return pl.pallas_call(
        _make_gated_kernel(activation, cp),
        out_shape=jax.ShapeDtypeStruct((cp, mp), jnp.float32),
        grid=(mp // tm,),
        in_specs=[
            pl.BlockSpec((n2, kp), lambda i: (0, 0)),   # packed [W; Wg]
            pl.BlockSpec((n2, 1), lambda i: (0, 0)),    # packed [b; bg]
            pl.BlockSpec((kp, tm), lambda i: (0, i)),   # P^T (M on lanes)
        ],
        out_specs=pl.BlockSpec((cp, tm), lambda i: (0, i)),
        compiler_params=pltpu.CompilerParams(
            dimension_semantics=("parallel",)),
        cost_estimate=cost,
    )(wt, b_cat, ptp)


# ----------------------------------------------------------------------------
# Gated causal conv / transposed conv blocks (bf16 im2col glue, channel-major)
# Both return the full padded-row output [Cp, B, T, F_out]; callers slice rows.
# ----------------------------------------------------------------------------
def causal_gated_conv_block(x, wt, b_cat, kt, kf, fstride, activation):
    # x: [Cin, B, T, F] -> [Cp, B, T, F_out]
    cin, b, t, f = x.shape
    xb = x.astype(jnp.bfloat16)                                 # bf16-first
    xp = jnp.pad(xb, ((0, 0), (0, 0), (kt - 1, 0), (0, 0)))     # causal time pad
    f_out = (f - kf) // fstride + 1
    cols = []
    for dt in range(kt):
        for df in range(kf):
            cols.append(xp[:, :, dt:dt + t,
                           df:df + (f_out - 1) * fstride + 1:fstride])
    ptmat = jnp.stack(cols, axis=1).reshape(cin * kt * kf, b * t * f_out)
    y = gated_matmul_t(ptmat, wt, b_cat, activation)
    cp = y.shape[0]
    return y[:, :b * t * f_out].reshape(cp, b, t, f_out)


def causal_trans_gated_conv_block(x, wt, b_cat, kt, kf, fstride, activation):
    # x: [Cin, B, T, F] -> [Cp, B, T, (F-1)*fstride + kf]
    # (transposed conv == zero-insert in freq + full conv with flipped kernel;
    #  the kernel flip / channel transpose is already baked into `wt` at pack time)
    cin, b, t, f = x.shape
    xb = x.astype(jnp.bfloat16)
    f_up = (f - 1) * fstride + 1
    x_up = jnp.zeros((cin, b, t, f_up), jnp.bfloat16).at[:, :, :, ::fstride].set(xb)
    xp = jnp.pad(x_up, ((0, 0), (0, 0), (kt - 1, 0), (kf - 1, kf - 1)))
    f_out = (f - 1) * fstride + kf
    cols = []
    for dt in range(kt):
        for df in range(kf):
            cols.append(xp[:, :, dt:dt + t, df:df + f_out])
    ptmat = jnp.stack(cols, axis=1).reshape(cin * kt * kf, b * t * f_out)
    y = gated_matmul_t(ptmat, wt, b_cat, activation)
    cp = y.shape[0]
    return y[:, :b * t * f_out].reshape(cp, b, t, f_out)


# ----------------------------------------------------------------------------
# Fully fused GroupedGRU: one pallas_call, all layers + all groups, in-kernel
# time loop, weights + hidden state resident in VMEM, 128-lane-dense stores.
# ----------------------------------------------------------------------------
def _make_gru_kernel(num_layers, dp):
    def kernel(x_ref, wi_ref, bi_ref, wh_ref, bh_ref, o_ref, h_ref):
        t_total = x_ref.shape[0]
        h_ref[...] = jnp.zeros_like(h_ref)        # zero initial state

        def step(t, carry):
            inp = x_ref[t]                        # [B, Dp] bf16
            last = None
            for l in range(num_layers):           # static unroll over layers
                h = h_ref[l]                      # [B, Dp] f32
                xp_ = jnp.dot(inp, wi_ref[l],
                              preferred_element_type=jnp.float32) + bi_ref[l]
                hp_ = jnp.dot(h.astype(wh_ref.dtype), wh_ref[l],
                              preferred_element_type=jnp.float32) + bh_ref[l]
                r = jax.nn.sigmoid(xp_[:, :dp] + hp_[:, :dp])
                z = jax.nn.sigmoid(xp_[:, dp:2 * dp] + hp_[:, dp:2 * dp])
                n = jnp.tanh(xp_[:, 2 * dp:] + r * hp_[:, 2 * dp:])
                h_new = (1.0 - z) * n + z * h
                h_ref[l] = h_new
                inp = h_new.astype(x_ref.dtype)    # feeds next stacked layer
                last = h_new
            o_ref[t] = last                        # [B, Dp] lane-dense store
            return carry

        lax.fori_loop(0, t_total, step, 0)

    return kernel


def grouped_gru_fused(x_tbd, gru_pack):
    """x_tbd: [T, B, Dp] bf16 -> [T, B, Dp] f32 (last layer hidden states)."""
    t, b, dp = x_tbd.shape
    wi, bi, wh, bh = gru_pack["wi"], gru_pack["bi"], gru_pack["wh"], gru_pack["bh"]
    num_layers = wi.shape[0]

    return pl.pallas_call(
        _make_gru_kernel(num_layers, dp),
        out_shape=jax.ShapeDtypeStruct((t, b, dp), jnp.float32),
        in_specs=[pl.BlockSpec(memory_space=pltpu.MemorySpace.VMEM)] * 5,
        out_specs=pl.BlockSpec(memory_space=pltpu.MemorySpace.VMEM),
        scratch_shapes=[pltpu.VMEM((num_layers, b, dp), jnp.float32)],
    )(x_tbd, wi, bi, wh, bh)


# ----------------------------------------------------------------------------
# Decoder head fusion plan (static, derived from cfg only)
# ----------------------------------------------------------------------------
def _dec_block0_fuse_plan(cfg):
    dec_cfg = cfg["num_channels_decoder"]
    n_dec = cfg["num_decoders"]
    if n_dec < 2:
        return None
    acts, cins = [], []
    for h in range(n_dec):
        n_blk = len(dec_cfg[h]) - 1
        acts.append(_ACT[cfg["nonlinearity"]] if n_blk > 1
                    else _ACT[cfg["output_nonlinearity"]])
        cins.append(dec_cfg[h][0])
    if len(set(acts)) != 1 or len(set(cins)) != 1:
        return None
    rows, off = [], 0
    for h in range(n_dec):
        co = dec_cfg[h][1]
        rows.append((off, co))
        off += _round_up(co, 8)
    return {"activation": acts[0], "rows": rows}


# ----------------------------------------------------------------------------
# GCRN forward
# ----------------------------------------------------------------------------
def gcrn_forward(packed, x_bctf, cfg):
    kt, kf = cfg["kernel_size"]
    fs = cfg["fstride"]
    act = _ACT[cfg["nonlinearity"]]
    out_act = _ACT[cfg["output_nonlinearity"]]
    enc_ch = cfg["num_channels_encoder"]
    dec_cfg = cfg["num_channels_decoder"]
    n_dec = cfg["num_decoders"]

    # channel-major working layout [C, B, T, F]
    x = jnp.transpose(x_bctf, (1, 0, 2, 3))

    encoder_outputs = []
    for i, p in enumerate(packed["encoder"]):
        y = causal_gated_conv_block(x, p["wt"], p["b"], kt, kf, fs, act)
        x = y[:enc_ch[i + 1]]
        encoder_outputs.append(x)

    # ---- GroupedGRU (single fused kernel) ----
    c, b, t, fb = x.shape
    d = c * fb
    dp = packed["gru"]["wi"].shape[1]
    xr = jnp.transpose(x, (2, 1, 0, 3)).reshape(t, b, d)        # [T, B, D]
    xr = jnp.pad(xr, ((0, 0), (0, 0), (0, dp - d))).astype(jnp.bfloat16)
    hh = grouped_gru_fused(xr, packed["gru"])                   # [T, B, Dp] f32
    x = jnp.transpose(hh[:, :, :d].reshape(t, b, c, fb), (2, 1, 0, 3))  # [C,B,T,Fb]

    # ---- decoders (block 0 fused across heads when possible) ----
    plan = _dec_block0_fuse_plan(cfg)
    skip0 = jnp.concatenate([x, encoder_outputs[-1]], axis=0)
    d_heads = []
    if plan is not None and "dec_block0" in packed:
        pk = packed["dec_block0"]
        y0 = causal_trans_gated_conv_block(skip0, pk["wt"], pk["b"],
                                           kt, kf, fs, plan["activation"])
        for (off, co) in plan["rows"]:
            d_heads.append(y0[off:off + co])
    else:
        for h in range(n_dec):
            n_blk = len(dec_cfg[h]) - 1
            a0 = act if n_blk > 1 else out_act
            p = packed["decoders"][h][0]
            y0 = causal_trans_gated_conv_block(skip0, p["wt"], p["b"],
                                               kt, kf, fs, a0)
            d_heads.append(y0[:dec_cfg[h][1]])

    outs = []
    for h in range(n_dec):
        dch = dec_cfg[h]
        dcur = d_heads[h]
        for i in range(1, len(dch) - 1):
            p = packed["decoders"][h][i]
            skip = jnp.concatenate([dcur, encoder_outputs[-1 - i]], axis=0)
            a = act if i < len(dch) - 2 else out_act
            y = causal_trans_gated_conv_block(skip, p["wt"], p["b"],
                                              kt, kf, fs, a)
            dcur = y[:dch[i + 1]]
        outs.append(jnp.transpose(dcur, (1, 0, 2, 3)))    # back to [B, C, T, F]
    return outs


# ----------------------------------------------------------------------------
# Parameter init (PyTorch-style layouts) + one-time packing for the kernels
# ----------------------------------------------------------------------------
def init_params(key, cfg):
    kt, kf = cfg["kernel_size"]
    enc = cfg["num_channels_encoder"]
    keys = iter(jax.random.split(key, 128))

    def nrm(shape, scale=0.1):
        return jax.random.normal(next(keys), shape, jnp.float32) * scale

    params = {"encoder": [], "gru": [], "decoders": []}
    fsize = cfg["fsize_input"]
    for i in range(len(enc) - 1):
        params["encoder"].append({
            "w": nrm((enc[i + 1], enc[i], kt, kf)),
            "b": nrm((enc[i + 1],)),
            "wg": nrm((enc[i + 1], enc[i], kt, kf)),
            "bg": nrm((enc[i + 1],)),
        })
        fsize = (fsize - kf) // cfg["fstride"] + 1

    d = fsize * enc[-1]
    assert d % cfg["n_gru_groups"] == 0
    gs = d // cfg["n_gru_groups"]
    for _ in range(cfg["n_gru_layers"]):
        layer = []
        for _ in range(cfg["n_gru_groups"]):
            layer.append({
                "wi": nrm((3, gs, gs)),
                "bi": nrm((3, 1, gs)),
                "wh": nrm((3, gs, gs)),
                "bh": nrm((3, 1, gs)),
            })
        params["gru"].append(layer)

    for h in range(cfg["num_decoders"]):
        dec_ch = cfg["num_channels_decoder"][h]
        blocks = []
        for i in range(len(dec_ch) - 1):
            cin = dec_ch[i] + enc[-1 - i]
            cout = dec_ch[i + 1]
            blocks.append({
                "w": nrm((cin, cout, kt, kf)),       # ConvTranspose2d layout
                "b": nrm((cout,)),
                "wg": nrm((cin, cout, kt, kf)),
                "bg": nrm((cout,)),
            })
        params["decoders"].append(blocks)
    return params


def pack_params(params, cfg):
    """One-time weight packing (runs outside jit, removes per-forward XLA glue)."""
    kt, kf = cfg["kernel_size"]

    def pack_gated_multi(ws, wgs, bs, bgs):
        # every w/wg: [Cout_h, Cin, kt, kf] in forward-conv orientation
        cin = ws[0].shape[1]
        k = cin * kt * kf
        kp = _round_up(k, 16)
        cps = [_round_up(w.shape[0], 8) for w in ws]
        cp_tot = sum(cps)
        wt = jnp.zeros((2 * cp_tot, kp), jnp.float32)
        bc = jnp.zeros((2 * cp_tot, 1), jnp.float32)
        off = 0
        for w, wg, b_, bg_, cph in zip(ws, wgs, bs, bgs, cps):
            co = w.shape[0]
            wt = wt.at[off:off + co, :k].set(w.reshape(co, k))
            wt = wt.at[cp_tot + off:cp_tot + off + co, :k].set(wg.reshape(co, k))
            bc = bc.at[off:off + co, 0].set(b_)
            bc = bc.at[cp_tot + off:cp_tot + off + co, 0].set(bg_)
            off += cph
        return {"wt": wt.astype(jnp.bfloat16), "b": bc}

    def trans_to_conv(w):
        # transposed conv -> equivalent conv kernel (flip taps, swap channels)
        return jnp.flip(w, axis=(2, 3)).transpose(1, 0, 2, 3)

    packed = {"encoder": [], "gru": {}, "decoders": []}

    for p in params["encoder"]:
        packed["encoder"].append(
            pack_gated_multi([p["w"]], [p["wg"]], [p["b"]], [p["bg"]]))

    # --- GroupedGRU: block-diagonal, gate-major, Dp(=128)-padded weights ---
    wi_l, bi_l, wh_l, bh_l = [], [], [], []
    for layer in params["gru"]:
        groups = len(layer)
        gs = layer[0]["wi"].shape[1]
        d = groups * gs
        dp = _round_up(d, 128)
        wi = jnp.zeros((dp, 3 * dp), jnp.float32)
        wh = jnp.zeros((dp, 3 * dp), jnp.float32)
        bi = jnp.zeros((1, 3 * dp), jnp.float32)
        bh = jnp.zeros((1, 3 * dp), jnp.float32)
        for g, gp in enumerate(layer):
            r0 = g * gs
            for gate in range(3):               # 0=r, 1=z, 2=n
                c0 = gate * dp + g * gs
                wi = wi.at[r0:r0 + gs, c0:c0 + gs].set(gp["wi"][gate])
                wh = wh.at[r0:r0 + gs, c0:c0 + gs].set(gp["wh"][gate])
                bi = bi.at[0, c0:c0 + gs].set(gp["bi"][gate, 0])
                bh = bh.at[0, c0:c0 + gs].set(gp["bh"][gate, 0])
        wi_l.append(wi); wh_l.append(wh); bi_l.append(bi); bh_l.append(bh)
    packed["gru"] = {
        "wi": jnp.stack(wi_l).astype(jnp.bfloat16),
        "bi": jnp.stack(bi_l),
        "wh": jnp.stack(wh_l).astype(jnp.bfloat16),
        "bh": jnp.stack(bh_l),
    }

    # --- decoders: per-head packs (all blocks) + fused block-0 pack ---
    for dec in params["decoders"]:
        blocks = []
        for p in dec:
            blocks.append(pack_gated_multi([trans_to_conv(p["w"])],
                                           [trans_to_conv(p["wg"])],
                                           [p["b"]], [p["bg"]]))
        packed["decoders"].append(blocks)

    if _dec_block0_fuse_plan(cfg) is not None:
        ws, wgs, bs, bgs = [], [], [], []
        for dec in params["decoders"]:
            p = dec[0]
            ws.append(trans_to_conv(p["w"]))
            wgs.append(trans_to_conv(p["wg"]))
            bs.append(p["b"])
            bgs.append(p["bg"])
        packed["dec_block0"] = pack_gated_multi(ws, wgs, bs, bgs)

    return packed


if __name__ == "__main__":
    cfg = {
        "fsize_input": 19,
        "num_channels_encoder": [2, 8, 16],
        "num_channels_decoder": [[16, 8, 1], [16, 8, 1]],
        "num_decoders": 2,
        "kernel_size": (2, 3),
        "fstride": 2,
        "n_gru_layers": 2,
        "n_gru_groups": 2,
        "nonlinearity": "ELU",
        "output_nonlinearity": "Sigmoid",
        "batch_norm": False,
    }

    key = jax.random.PRNGKey(0)
    k_params, k_x = jax.random.split(key)
    raw_params = init_params(k_params, cfg)
    packed_params = pack_params(raw_params, cfg)

    B, C, T, F = 2, cfg["num_channels_encoder"][0], 8, cfg["fsize_input"]
    x = jax.random.normal(k_x, (B, C, T, F), jnp.float32)

    fwd = jax.jit(lambda p, xx: gcrn_forward(p, xx, cfg))
    outs = fwd(packed_params, x)
    outs = jax.block_until_ready(outs)

    assert len(outs) == cfg["num_decoders"]
    for o in outs:
        assert o.shape == (B, 1, T, F), o.shape
        assert bool(jnp.all(jnp.isfinite(o)))
    print("KERNEL_OK")
</pallas_src>

<mosaic_0001>
module attributes {stable_mosaic.version = 11 : i64} {
  func.func @kernel(%arg0: i32, %arg1: memref<16x16xbf16, #tpu.memory_space<vmem>>, %arg2: memref<16x1xf32, #tpu.memory_space<vmem>>, %arg3: memref<16x256xbf16, #tpu.memory_space<vmem>>, %arg4: memref<8x256xf32, #tpu.memory_space<vmem>>) attributes {dimension_semantics = [#tpu.dimension_semantics<parallel>], iteration_bounds = array<i64: 1>, scalar_prefetch = 0 : i64, scratch_operands = 0 : i64, tpu.core_type = #tpu.core_type<tc>, window_params = [{pipeline_mode = #tpu.pipeline_mode<synchronous>, transform_indices = @transform_0, window_bounds = array<i64: 16, 16>}, {pipeline_mode = #tpu.pipeline_mode<synchronous>, transform_indices = @transform_1, window_bounds = array<i64: 16, 1>}, {transform_indices = @transform_2, window_bounds = array<i64: 16, 256>}, {transform_indices = @transform_3, window_bounds = array<i64: 8, 256>}]} {
    %c0 = arith.constant 0 : index
    %c0_0 = arith.constant 0 : index
    %0 = vector.load %arg1[%c0, %c0_0] : memref<16x16xbf16, #tpu.memory_space<vmem>>, vector<16x16xbf16>
    %c0_1 = arith.constant 0 : index
    %c0_2 = arith.constant 0 : index
    %1 = vector.load %arg3[%c0_1, %c0_2] : memref<16x256xbf16, #tpu.memory_space<vmem>>, vector<16x256xbf16>
    %cst = arith.constant dense<0.000000e+00> : vector<16x256xf32>
    %2 = tpu.matmul %0, %1, %cst {dimension_numbers = #tpu.dot_dimension_numbers<[1], [0], [0], [1], [0, 0, 1, 1], [], []>} : vector<16x16xbf16>, vector<16x256xbf16>, vector<16x256xf32> -> vector<16x256xf32>
    %c0_3 = arith.constant 0 : index
    %c0_4 = arith.constant 0 : index
    %3 = vector.load %arg2[%c0_3, %c0_4] : memref<16x1xf32, #tpu.memory_space<vmem>>, vector<16x1xf32>
    %4 = vector.broadcast %3 : vector<16x1xf32> to vector<16x256xf32>
    %5 = arith.addf %2, %4 : vector<16x256xf32>
    %6 = vector.extract_strided_slice %5 {offsets = [0, 0], sizes = [8, 256], strides = [1, 1]} : vector<16x256xf32> to vector<8x256xf32>
    %7 = vector.extract_strided_slice %5 {offsets = [8, 0], sizes = [8, 256], strides = [1, 1]} : vector<16x256xf32> to vector<8x256xf32>
    %8 = arith.negf %7 : vector<8x256xf32>
    %9 = math.exp %8 : vector<8x256xf32>
    %cst_5 = arith.constant 1.000000e+00 : f32
    %10 = vector.broadcast %cst_5 : f32 to vector<8x256xf32>
    %11 = arith.addf %10, %9 : vector<8x256xf32>
    %12 = arith.divf %10, %11 : vector<8x256xf32>
    %13 = arith.mulf %12, %6 : vector<8x256xf32>
    %cst_6 = arith.constant 0.000000e+00 : f32
    %14 = vector.broadcast %cst_6 : f32 to vector<8x256xf32>
    %15 = arith.cmpf ogt, %13, %14 : vector<8x256xf32>
    %cst_7 = arith.constant 0.000000e+00 : f32
    %16 = vector.broadcast %cst_7 : f32 to vector<8x256xf32>
    %17 = arith.minimumf %13, %16 : vector<8x256xf32>
    %18 = math.exp %17 : vector<8x256xf32>
    %cst_8 = arith.constant 1.000000e+00 : f32
    %19 = vector.broadcast %cst_8 : f32 to vector<8x256xf32>
    %20 = arith.subf %18, %19 : vector<8x256xf32>
    %21 = arith.select %15, %13, %20 : vector<8x256xi1>, vector<8x256xf32>
    %c0_9 = arith.constant 0 : index
    %c0_10 = arith.constant 0 : index
    %22 = vector.load %arg4[%c0_9, %c0_10] : memref<8x256xf32, #tpu.memory_space<vmem>>, vector<8x256xf32>
    tpu.vector_store %arg4[%c0_9, %c0_10], %21 {strides = array<i32>} : memref<8x256xf32, #tpu.memory_space<vmem>>, vector<8x256xf32>,
    return
  }
  func.func @transform_0(%arg0: i32) -> (i32, i32) {
    %c0_i32 = arith.constant 0 : i32
    %c0_i32_0 = arith.constant 0 : i32
    %c0_i32_1 = arith.constant 0 : i32
    return %c0_i32, %c0_i32_0 : i32, i32
  }
  func.func @transform_1(%arg0: i32) -> (i32, i32) {
    %c0_i32 = arith.constant 0 : i32
    %c0_i32_0 = arith.constant 0 : i32
    %c0_i32_1 = arith.constant 0 : i32
    return %c0_i32, %c0_i32_0 : i32, i32
  }
  func.func @transform_2(%arg0: i32) -> (i32, i32) {
    %c0_i32 = arith.constant 0 : i32
    %c0_i32_0 = arith.constant 0 : i32
    return %c0_i32, %arg0 : i32, i32
  }
  func.func @transform_3(%arg0: i32) -> (i32, i32) {
    %c0_i32 = arith.constant 0 : i32
    %c0_i32_0 = arith.constant 0 : i32
    return %c0_i32, %arg0 : i32, i32
  }
}

module attributes {stable_mosaic.version = 11 : i64} {
  func.func @kernel(%arg0: i32, %arg1: memref<32x48xbf16, #tpu.memory_space<vmem>>, %arg2: memref<32x1xf32, #tpu.memory_space<vmem>>, %arg3: memref<48x128xbf16, #tpu.memory_space<vmem>>, %arg4: memref<16x128xf32, #tpu.memory_space<vmem>>) attributes {dimension_semantics = [#tpu.dimension_semantics<parallel>], iteration_bounds = array<i64: 1>, scalar_prefetch = 0 : i64, scratch_operands = 0 : i64, tpu.core_type = #tpu.core_type<tc>, window_params = [{pipeline_mode = #tpu.pipeline_mode<synchronous>, transform_indices = @transform_0, window_bounds = array<i64: 32, 48>}, {pipeline_mode = #tpu.pipeline_mode<synchronous>, transform_indices = @transform_1, window_bounds = array<i64: 32, 1>}, {transform_indices = @transform_2, window_bounds = array<i64: 48, 128>}, {transform_indices = @transform_3, window_bounds = array<i64: 16, 128>}]} {
    %c0 = arith.constant 0 : index
    %c0_0 = arith.constant 0 : index
    %0 = vector.load %arg1[%c0, %c0_0] : memref<32x48xbf16, #tpu.memory_space<vmem>>, vector<32x48xbf16>
    %c0_1 = arith.constant 0 : index
    %c0_2 = arith.constant 0 : index
    %1 = vector.load %arg3[%c0_1, %c0_2] : memref<48x128xbf16, #tpu.memory_space<vmem>>, vector<48x128xbf16>
    %cst = arith.constant dense<0.000000e+00> : vector<32x128xf32>
    %2 = tpu.matmul %0, %1, %cst {dimension_numbers = #tpu.dot_dimension_numbers<[1], [0], [0], [1], [0, 0, 1, 1], [], []>} : vector<32x48xbf16>, vector<48x128xbf16>, vector<32x128xf32> -> vector<32x128xf32>
    %c0_3 = arith.constant 0 : index
    %c0_4 = arith.constant 0 : index
    %3 = vector.load %arg2[%c0_3, %c0_4] : memref<32x1xf32, #tpu.memory_space<vmem>>, vector<32x1xf32>
    %4 = vector.broadcast %3 : vector<32x1xf32> to vector<32x128xf32>
    %5 = arith.addf %2, %4 : vector<32x128xf32>
    %6 = vector.extract_strided_slice %5 {offsets = [0, 0], sizes = [16, 128], strides = [1, 1]} : vector<32x128xf32> to vector<16x128xf32>
    %7 = vector.extract_strided_slice %5 {offsets = [16, 0], sizes = [16, 128], strides = [1, 1]} : vector<32x128xf32> to vector<16x128xf32>
    %8 = arith.negf %7 : vector<16x128xf32>
    %9 = math.exp %8 : vector<16x128xf32>
    %cst_5 = arith.constant 1.000000e+00 : f32
    %10 = vector.broadcast %cst_5 : f32 to vector<16x128xf32>
    %11 = arith.addf %10, %9 : vector<16x128xf32>
    %12 = arith.divf %10, %11 : vector<16x128xf32>
    %13 = arith.mulf %12, %6 : vector<16x128xf32>
    %cst_6 = arith.constant 0.000000e+00 : f32
    %14 = vector.broadcast %cst_6 : f32 to vector<16x128xf32>
    %15 = arith.cmpf ogt, %13, %14 : vector<16x128xf32>
    %cst_7 = arith.constant 0.000000e+00 : f32
    %16 = vector.broadcast %cst_7 : f32 to vector<16x128xf32>
    %17 = arith.minimumf %13, %16 : vector<16x128xf32>
    %18 = math.exp %17 : vector<16x128xf32>
    %cst_8 = arith.constant 1.000000e+00 : f32
    %19 = vector.broadcast %cst_8 : f32 to vector<16x128xf32>
    %20 = arith.subf %18, %19 : vector<16x128xf32>
    %21 = arith.select %15, %13, %20 : vector<16x128xi1>, vector<16x128xf32>
    %c0_9 = arith.constant 0 : index
    %c0_10 = arith.constant 0 : index
    %22 = vector.load %arg4[%c0_9, %c0_10] : memref<16x128xf32, #tpu.memory_space<vmem>>, vector<16x128xf32>
    tpu.vector_store %arg4[%c0_9, %c0_10], %21 {strides = array<i32>} : memref<16x128xf32, #tpu.memory_space<vmem>>, vector<16x128xf32>,
    return
  }
  func.func @transform_0(%arg0: i32) -> (i32, i32) {
    %c0_i32 = arith.constant 0 : i32
    %c0_i32_0 = arith.constant 0 : i32
    %c0_i32_1 = arith.constant 0 : i32
    return %c0_i32, %c0_i32_0 : i32, i32
  }
  func.func @transform_1(%arg0: i32) -> (i32, i32) {
    %c0_i32 = arith.constant 0 : i32
    %c0_i32_0 = arith.constant 0 : i32
    %c0_i32_1 = arith.constant 0 : i32
    return %c0_i32, %c0_i32_0 : i32, i32
  }
  func.func @transform_2(%arg0: i32) -> (i32, i32) {
    %c0_i32 = arith.constant 0 : i32
    %c0_i32_0 = arith.constant 0 : i32
    return %c0_i32, %arg0 : i32, i32
  }
  func.func @transform_3(%arg0: i32) -> (i32, i32) {
    %c0_i32 = arith.constant 0 : i32
    %c0_i32_0 = arith.constant 0 : i32
    return %c0_i32, %arg0 : i32, i32
  }
}

module attributes {stable_mosaic.version = 11 : i64} {
  func.func @kernel(%arg0: memref<8x2x128xbf16, #tpu.memory_space<vmem>>, %arg1: memref<2x128x384xbf16, #tpu.memory_space<vmem>>, %arg2: memref<2x1x384xf32, #tpu.memory_space<vmem>>, %arg3: memref<2x128x384xbf16, #tpu.memory_space<vmem>>, %arg4: memref<2x1x384xf32, #tpu.memory_space<vmem>>, %arg5: memref<8x2x128xf32, #tpu.memory_space<vmem>>, %arg6: memref<2x2x128xf32, #tpu.memory_space<vmem>>) attributes {dimension_semantics = [], scalar_prefetch = 0 : i64, scratch_operands = 1 : i64, tpu.core_type = #tpu.core_type<tc>} {
    %cst = arith.constant 0.000000e+00 : f32
    %0 = vector.broadcast %cst : f32 to vector<2x2x128xf32>
    %c0 = arith.constant 0 : index
    %c0_0 = arith.constant 0 : index
    %c0_1 = arith.constant 0 : index
    %1 = vector.load %arg6[%c0, %c0_0, %c0_1] : memref<2x2x128xf32, #tpu.memory_space<vmem>>, vector<2x2x128xf32>
    tpu.vector_store %arg6[%c0, %c0_0, %c0_1], %0 {strides = array<i32>} : memref<2x2x128xf32, #tpu.memory_space<vmem>>, vector<2x2x128xf32>,
    %c0_i32 = arith.constant 0 : i32
    %c8_i32 = arith.constant 8 : i32
    %2 = arith.addi %c0_i32, %c8_i32 : i32
    %c1_i32 = arith.constant 1 : i32
    scf.for %arg7 = %c0_i32 to %2 step %c1_i32  : i32 {
      %3 = arith.index_cast %arg7 : i32 to index
      %c0_3 = arith.constant 0 : index
      %c0_4 = arith.constant 0 : index
      %4 = vector.load %arg0[%3, %c0_3, %c0_4] : memref<8x2x128xbf16, #tpu.memory_space<vmem>>, vector<1x2x128xbf16>
      %5 = vector.shape_cast %4 : vector<1x2x128xbf16> to vector<2x128xbf16>
      %c0_5 = arith.constant 0 : index
      %c0_6 = arith.constant 0 : index
      %c0_7 = arith.constant 0 : index
      %6 = vector.load %arg6[%c0_5, %c0_6, %c0_7] : memref<2x2x128xf32, #tpu.memory_space<vmem>>, vector<1x2x128xf32>
      %7 = vector.shape_cast %6 : vector<1x2x128xf32> to vector<2x128xf32>
      %c0_8 = arith.constant 0 : index
      %c0_9 = arith.constant 0 : index
      %c0_10 = arith.constant 0 : index
      %8 = vector.load %arg1[%c0_8, %c0_9, %c0_10] : memref<2x128x384xbf16, #tpu.memory_space<vmem>>, vector<1x128x384xbf16>
      %9 = vector.shape_cast %8 : vector<1x128x384xbf16> to vector<128x384xbf16>
      %cst_11 = arith.constant dense<0.000000e+00> : vector<2x384xf32>
      %10 = tpu.matmul %5, %9, %cst_11 {dimension_numbers = #tpu.dot_dimension_numbers<[1], [0], [0], [1], [0, 0, 1, 1], [], []>} : vector<2x128xbf16>, vector<128x384xbf16>, vector<2x384xf32> -> vector<2x384xf32>
      %c0_12 = arith.constant 0 : index
      %c0_13 = arith.constant 0 : index
      %c0_14 = arith.constant 0 : index
      %11 = vector.load %arg2[%c0_12, %c0_13, %c0_14] : memref<2x1x384xf32, #tpu.memory_space<vmem>>, vector<1x1x384xf32>
      %12 = vector.shape_cast %11 : vector<1x1x384xf32> to vector<1x384xf32>
      %13 = vector.broadcast %12 : vector<1x384xf32> to vector<2x384xf32>
      %14 = arith.addf %10, %13 : vector<2x384xf32>
      %15 = arith.truncf %7 : vector<2x128xf32> to vector<2x128xbf16>
      %c0_15 = arith.constant 0 : index
      %c0_16 = arith.constant 0 : index
      %c0_17 = arith.constant 0 : index
      %16 = vector.load %arg3[%c0_15, %c0_16, %c0_17] : memref<2x128x384xbf16, #tpu.memory_space<vmem>>, vector<1x128x384xbf16>
      %17 = vector.shape_cast %16 : vector<1x128x384xbf16> to vector<128x384xbf16>
      %cst_18 = arith.constant dense<0.000000e+00> : vector<2x384xf32>
      %18 = tpu.matmul %15, %17, %cst_18 {dimension_numbers = #tpu.dot_dimension_numbers<[1], [0], [0], [1], [0, 0, 1, 1], [], []>} : vector<2x128xbf16>, vector<128x384xbf16>, vector<2x384xf32> -> vector<2x384xf32>
      %c0_19 = arith.constant 0 : index
      %c0_20 = arith.constant 0 : index
      %c0_21 = arith.constant 0 : index
      %19 = vector.load %arg4[%c0_19, %c0_20, %c0_21] : memref<2x1x384xf32, #tpu.memory_space<vmem>>, vector<1x1x384xf32>
      %20 = vector.shape_cast %19 : vector<1x1x384xf32> to vector<1x384xf32>
      %21 = vector.broadcast %20 : vector<1x384xf32> to vector<2x384xf32>
      %22 = arith.addf %18, %21 : vector<2x384xf32>
      %23 = vector.extract_strided_slice %14 {offsets = [0, 0], sizes = [2, 128], strides = [1, 1]} : vector<2x384xf32> to vector<2x128xf32>
      %24 = vector.extract_strided_slice %22 {offsets = [0, 0], sizes = [2, 128], strides = [1, 1]} : vector<2x384xf32> to vector<2x128xf32>
      %25 = arith.addf %23, %24 : vector<2x128xf32>
      %26 = arith.negf %25 : vector<2x128xf32>
      %27 = math.exp %26 : vector<2x128xf32>
      %cst_22 = arith.constant 1.000000e+00 : f32
      %28 = vector.broadcast %cst_22 : f32 to vector<2x128xf32>
      %29 = arith.addf %28, %27 : vector<2x128xf32>
      %30 = arith.divf %28, %29 : vector<2x128xf32>
      %31 = vector.extract_strided_slice %14 {offsets = [0, 128], sizes = [2, 128], strides = [1, 1]} : vector<2x384xf32> to vector<2x128xf32>
      %32 = vector.extract_strided_slice %22 {offsets = [0, 128], sizes = [2, 128], strides = [1, 1]} : vector<2x384xf32> to vector<2x128xf32>
      %33 = arith.addf %31, %32 : vector<2x128xf32>
      %34 = arith.negf %33 : vector<2x128xf32>
      %35 = math.exp %34 : vector<2x128xf32>
      %cst_23 = arith.constant 1.000000e+00 : f32
      %36 = vector.broadcast %cst_23 : f32 to vector<2x128xf32>
      %37 = arith.addf %36, %35 : vector<2x128xf32>
      %38 = arith.divf %36, %37 : vector<2x128xf32>
      %39 = vector.extract_strided_slice %14 {offsets = [0, 256], sizes = [2, 128], strides = [1, 1]} : vector<2x384xf32> to vector<2x128xf32>
      %40 = vector.extract_strided_slice %22 {offsets = [0, 256], sizes = [2, 128], strides = [1, 1]} : vector<2x384xf32> to vector<2x128xf32>
      %41 = arith.mulf %30, %40 : vector<2x128xf32>
      %42 = arith.addf %39, %41 : vector<2x128xf32>
      %43 = math.tanh %42 : vector<2x128xf32>
      %cst_24 = arith.constant 1.000000e+00 : f32
      %44 = vector.broadcast %cst_24 : f32 to vector<2x128xf32>
      %45 = arith.subf %44, %38 : vector<2x128xf32>
      %46 = arith.mulf %45, %43 : vector<2x128xf32>
      %47 = arith.mulf %38, %7 : vector<2x128xf32>
      %48 = arith.addf %46, %47 : vector<2x128xf32>
      %c0_25 = arith.constant 0 : index
      %c0_26 = arith.constant 0 : index
      %c0_27 = arith.constant 0 : index
      %49 = vector.load %arg6[%c0_25, %c0_26, %c0_27] : memref<2x2x128xf32, #tpu.memory_space<vmem>>, vector<1x2x128xf32>
      %50 = vector.shape_cast %49 : vector<1x2x128xf32> to vector<2x128xf32>
      %51 = vector.shape_cast %48 : vector<2x128xf32> to vector<1x2x128xf32>
      tpu.vector_store %arg6[%c0_25, %c0_26, %c0_27], %51 {strides = array<i32>} : memref<2x2x128xf32, #tpu.memory_space<vmem>>, vector<1x2x128xf32>,
      %52 = arith.truncf %48 : vector<2x128xf32> to vector<2x128xbf16>
      %c1 = arith.constant 1 : index
      %c0_28 = arith.constant 0 : index
      %c0_29 = arith.constant 0 : index
      %53 = vector.load %arg6[%c1, %c0_28, %c0_29] : memref<2x2x128xf32, #tpu.memory_space<vmem>>, vector<1x2x128xf32>
      %54 = vector.shape_cast %53 : vector<1x2x128xf32> to vector<2x128xf32>
      %c1_30 = arith.constant 1 : index
      %c0_31 = arith.constant 0 : index
      %c0_32 = arith.constant 0 : index
      %55 = vector.load %arg1[%c1_30, %c0_31, %c0_32] : memref<2x128x384xbf16, #tpu.memory_space<vmem>>, vector<1x128x384xbf16>
      %56 = vector.shape_cast %55 : vector<1x128x384xbf16> to vector<128x384xbf16>
      %cst_33 = arith.constant dense<0.000000e+00> : vector<2x384xf32>
      %57 = tpu.matmul %52, %56, %cst_33 {dimension_numbers = #tpu.dot_dimension_numbers<[1], [0], [0], [1], [0, 0, 1, 1], [], []>} : vector<2x128xbf16>, vector<128x384xbf16>, vector<2x384xf32> -> vector<2x384xf32>
      %c1_34 = arith.constant 1 : index
      %c0_35 = arith.constant 0 : index
      %c0_36 = arith.constant 0 : index
      %58 = vector.load %arg2[%c1_34, %c0_35, %c0_36] : memref<2x1x384xf32, #tpu.memory_space<vmem>>, vector<1x1x384xf32>
      %59 = vector.shape_cast %58 : vector<1x1x384xf32> to vector<1x384xf32>
      %60 = vector.broadcast %59 : vector<1x384xf32> to vector<2x384xf32>
      %61 = arith.addf %57, %60 : vector<2x384xf32>
      %62 = arith.truncf %54 : vector<2x128xf32> to vector<2x128xbf16>
      %c1_37 = arith.constant 1 : index
      %c0_38 = arith.constant 0 : index
      %c0_39 = arith.constant 0 : index
      %63 = vector.load %arg3[%c1_37, %c0_38, %c0_39] : memref<2x128x384xbf16, #tpu.memory_space<vmem>>, vector<1x128x384xbf16>
      %64 = vector.shape_cast %63 : vector<1x128x384xbf16> to vector<128x384xbf16>
      %cst_40 = arith.constant dense<0.000000e+00> : vector<2x384xf32>
      %65 = tpu.matmul %62, %64, %cst_40 {dimension_numbers = #tpu.dot_dimension_numbers<[1], [0], [0], [1], [0, 0, 1, 1], [], []>} : vector<2x128xbf16>, vector<128x384xbf16>, vector<2x384xf32> -> vector<2x384xf32>
      %c1_41 = arith.constant 1 : index
      %c0_42 = arith.constant 0 : index
      %c0_43 = arith.constant 0 : index
      %66 = vector.load %arg4[%c1_41, %c0_42, %c0_43] : memref<2x1x384xf32, #tpu.memory_space<vmem>>, vector<1x1x384xf32>
      %67 = vector.shape_cast %66 : vector<1x1x384xf32> to vector<1x384xf32>
      %68 = vector.broadcast %67 : vector<1x384xf32> to vector<2x384xf32>
      %69 = arith.addf %65, %68 : vector<2x384xf32>
      %70 = vector.extract_strided_slice %61 {offsets = [0, 0], sizes = [2, 128], strides = [1, 1]} : vector<2x384xf32> to vector<2x128xf32>
      %71 = vector.extract_strided_slice %69 {offsets = [0, 0], sizes = [2, 128], strides = [1, 1]} : vector<2x384xf32> to vector<2x128xf32>
      %72 = arith.addf %70, %71 : vector<2x128xf32>
      %73 = arith.negf %72 : vector<2x128xf32>
      %74 = math.exp %73 : vector<2x128xf32>
      %cst_44 = arith.constant 1.000000e+00 : f32
      %75 = vector.broadcast %cst_44 : f32 to vector<2x128xf32>
      %76 = arith.addf %75, %74 : vector<2x128xf32>
      %77 = arith.divf %75, %76 : vector<2x128xf32>
      %78 = vector.extract_strided_slice %61 {offsets = [0, 128], sizes = [2, 128], strides = [1, 1]} : vector<2x384xf32> to vector<2x128xf32>
      %79 = vector.extract_strided_slice %69 {offsets = [0, 128], sizes = [2, 128], strides = [1, 1]} : vector<2x384xf32> to vector<2x128xf32>
      %80 = arith.addf %78, %79 : vector<2x128xf32>
      %81 = arith.negf %80 : vector<2x128xf32>
      %82 = math.exp %81 : vector<2x128xf32>
      %cst_45 = arith.constant 1.000000e+00 : f32
      %83 = vector.broadcast %cst_45 : f32 to vector<2x128xf32>
      %84 = arith.addf %83, %82 : vector<2x128xf32>
      %85 = arith.divf %83, %84 : vector<2x128xf32>
      %86 = vector.extract_strided_slice %61 {offsets = [0, 256], sizes = [2, 128], strides = [1, 1]} : vector<2x384xf32> to vector<2x128xf32>
      %87 = vector.extract_strided_slice %69 {offsets = [0, 256], sizes = [2, 128], strides = [1, 1]} : vector<2x384xf32> to vector<2x128xf32>
      %88 = arith.mulf %77, %87 : vector<2x128xf32>
      %89 = arith.addf %86, %88 : vector<2x128xf32>
      %90 = math.tanh %89 : vector<2x128xf32>
      %cst_46 = arith.constant 1.000000e+00 : f32
      %91 = vector.broadcast %cst_46 : f32 to vector<2x128xf32>
      %92 = arith.subf %91, %85 : vector<2x128xf32>
      %93 = arith.mulf %92, %90 : vector<2x128xf32>
      %94 = arith.mulf %85, %54 : vector<2x128xf32>
      %95 = arith.addf %93, %94 : vector<2x128xf32>
      %c1_47 = arith.constant 1 : index
      %c0_48 = arith.constant 0 : index
      %c0_49 = arith.constant 0 : index
      %96 = vector.load %arg6[%c1_47, %c0_48, %c0_49] : memref<2x2x128xf32, #tpu.memory_space<vmem>>, vector<1x2x128xf32>
      %97 = vector.shape_cast %96 : vector<1x2x128xf32> to vector<2x128xf32>
      %98 = vector.shape_cast %95 : vector<2x128xf32> to vector<1x2x128xf32>
      tpu.vector_store %arg6[%c1_47, %c0_48, %c0_49], %98 {strides = array<i32>} : memref<2x2x128xf32, #tpu.memory_space<vmem>>, vector<1x2x128xf32>,
      %99 = arith.index_cast %arg7 : i32 to index
      %c0_50 = arith.constant 0 : index
      %c0_51 = arith.constant 0 : index
      %100 = vector.load %arg5[%99, %c0_50, %c0_51] : memref<8x2x128xf32, #tpu.memory_space<vmem>>, vector<1x2x128xf32>
      %101 = vector.shape_cast %100 : vector<1x2x128xf32> to vector<2x128xf32>
      %102 = vector.shape_cast %95 : vector<2x128xf32> to vector<1x2x128xf32>
      tpu.vector_store %arg5[%99, %c0_50, %c0_51], %102 {strides = array<i32>} : memref<8x2x128xf32, #tpu.memory_space<vmem>>, vector<1x2x128xf32>,
    }
    %c8_i32_2 = arith.constant 8 : i32
    return
  }
}

module attributes {stable_mosaic.version = 11 : i64} {
  func.func @kernel(%arg0: i32, %arg1: memref<32x192xbf16, #tpu.memory_space<vmem>>, %arg2: memref<32x1xf32, #tpu.memory_space<vmem>>, %arg3: memref<192x256xbf16, #tpu.memory_space<vmem>>, %arg4: memref<16x256xf32, #tpu.memory_space<vmem>>) attributes {dimension_semantics = [#tpu.dimension_semantics<parallel>], iteration_bounds = array<i64: 1>, scalar_prefetch = 0 : i64, scratch_operands = 0 : i64, tpu.core_type = #tpu.core_type<tc>, window_params = [{pipeline_mode = #tpu.pipeline_mode<synchronous>, transform_indices = @transform_0, window_bounds = array<i64: 32, 192>}, {pipeline_mode = #tpu.pipeline_mode<synchronous>, transform_indices = @transform_1, window_bounds = array<i64: 32, 1>}, {transform_indices = @transform_2, window_bounds = array<i64: 192, 256>}, {transform_indices = @transform_3, window_bounds = array<i64: 16, 256>}]} {
    %c0 = arith.constant 0 : index
    %c0_0 = arith.constant 0 : index
    %0 = vector.load %arg1[%c0, %c0_0] : memref<32x192xbf16, #tpu.memory_space<vmem>>, vector<32x192xbf16>
    %c0_1 = arith.constant 0 : index
    %c0_2 = arith.constant 0 : index
    %1 = vector.load %arg3[%c0_1, %c0_2] : memref<192x256xbf16, #tpu.memory_space<vmem>>, vector<192x256xbf16>
    %cst = arith.constant dense<0.000000e+00> : vector<32x256xf32>
    %2 = tpu.matmul %0, %1, %cst {dimension_numbers = #tpu.dot_dimension_numbers<[1], [0], [0], [1], [0, 0, 1, 1], [], []>} : vector<32x192xbf16>, vector<192x256xbf16>, vector<32x256xf32> -> vector<32x256xf32>
    %c0_3 = arith.constant 0 : index
    %c0_4 = arith.constant 0 : index
    %3 = vector.load %arg2[%c0_3, %c0_4] : memref<32x1xf32, #tpu.memory_space<vmem>>, vector<32x1xf32>
    %4 = vector.broadcast %3 : vector<32x1xf32> to vector<32x256xf32>
    %5 = arith.addf %2, %4 : vector<32x256xf32>
    %6 = vector.extract_strided_slice %5 {offsets = [0, 0], sizes = [16, 256], strides = [1, 1]} : vector<32x256xf32> to vector<16x256xf32>
    %7 = vector.extract_strided_slice %5 {offsets = [16, 0], sizes = [16, 256], strides = [1, 1]} : vector<32x256xf32> to vector<16x256xf32>
    %8 = arith.negf %7 : vector<16x256xf32>
    %9 = math.exp %8 : vector<16x256xf32>
    %cst_5 = arith.constant 1.000000e+00 : f32
    %10 = vector.broadcast %cst_5 : f32 to vector<16x256xf32>
    %11 = arith.addf %10, %9 : vector<16x256xf32>
    %12 = arith.divf %10, %11 : vector<16x256xf32>
    %13 = arith.mulf %12, %6 : vector<16x256xf32>
    %cst_6 = arith.constant 0.000000e+00 : f32
    %14 = vector.broadcast %cst_6 : f32 to vector<16x256xf32>
    %15 = arith.cmpf ogt, %13, %14 : vector<16x256xf32>
    %cst_7 = arith.constant 0.000000e+00 : f32
    %16 = vector.broadcast %cst_7 : f32 to vector<16x256xf32>
    %17 = arith.minimumf %13, %16 : vector<16x256xf32>
    %18 = math.exp %17 : vector<16x256xf32>
    %cst_8 = arith.constant 1.000000e+00 : f32
    %19 = vector.broadcast %cst_8 : f32 to vector<16x256xf32>
    %20 = arith.subf %18, %19 : vector<16x256xf32>
    %21 = arith.select %15, %13, %20 : vector<16x256xi1>, vector<16x256xf32>
    %c0_9 = arith.constant 0 : index
    %c0_10 = arith.constant 0 : index
    %22 = vector.load %arg4[%c0_9, %c0_10] : memref<16x256xf32, #tpu.memory_space<vmem>>, vector<16x256xf32>
    tpu.vector_store %arg4[%c0_9, %c0_10], %21 {strides = array<i32>} : memref<16x256xf32, #tpu.memory_space<vmem>>, vector<16x256xf32>,
    return
  }
  func.func @transform_0(%arg0: i32) -> (i32, i32) {
    %c0_i32 = arith.constant 0 : i32
    %c0_i32_0 = arith.constant 0 : i32
    %c0_i32_1 = arith.constant 0 : i32
    return %c0_i32, %c0_i32_0 : i32, i32
  }
  func.func @transform_1(%arg0: i32) -> (i32, i32) {
    %c0_i32 = arith.constant 0 : i32
    %c0_i32_0 = arith.constant 0 : i32
    %c0_i32_1 = arith.constant 0 : i32
    return %c0_i32, %c0_i32_0 : i32, i32
  }
  func.func @transform_2(%arg0: i32) -> (i32, i32) {
    %c0_i32 = arith.constant 0 : i32
    %c0_i32_0 = arith.constant 0 : i32
    return %c0_i32, %arg0 : i32, i32
  }
  func.func @transform_3(%arg0: i32) -> (i32, i32) {
    %c0_i32 = arith.constant 0 : i32
    %c0_i32_0 = arith.constant 0 : i32
    return %c0_i32, %arg0 : i32, i32
  }
}

module attributes {stable_mosaic.version = 11 : i64} {
  func.func @kernel(%arg0: i32, %arg1: memref<16x96xbf16, #tpu.memory_space<vmem>>, %arg2: memref<16x1xf32, #tpu.memory_space<vmem>>, %arg3: memref<96x384xbf16, #tpu.memory_space<vmem>>, %arg4: memref<8x384xf32, #tpu.memory_space<vmem>>) attributes {dimension_semantics = [#tpu.dimension_semantics<parallel>], iteration_bounds = array<i64: 1>, scalar_prefetch = 0 : i64, scratch_operands = 0 : i64, tpu.core_type = #tpu.core_type<tc>, window_params = [{pipeline_mode = #tpu.pipeline_mode<synchronous>, transform_indices = @transform_0, window_bounds = array<i64: 16, 96>}, {pipeline_mode = #tpu.pipeline_mode<synchronous>, transform_indices = @transform_1, window_bounds = array<i64: 16, 1>}, {transform_indices = @transform_2, window_bounds = array<i64: 96, 384>}, {transform_indices = @transform_3, window_bounds = array<i64: 8, 384>}]} {
    %c0 = arith.constant 0 : index
    %c0_0 = arith.constant 0 : index
    %0 = vector.load %arg1[%c0, %c0_0] : memref<16x96xbf16, #tpu.memory_space<vmem>>, vector<16x96xbf16>
    %c0_1 = arith.constant 0 : index
    %c0_2 = arith.constant 0 : index
    %1 = vector.load %arg3[%c0_1, %c0_2] : memref<96x384xbf16, #tpu.memory_space<vmem>>, vector<96x384xbf16>
    %cst = arith.constant dense<0.000000e+00> : vector<16x384xf32>
    %2 = tpu.matmul %0, %1, %cst {dimension_numbers = #tpu.dot_dimension_numbers<[1], [0], [0], [1], [0, 0, 1, 1], [], []>} : vector<16x96xbf16>, vector<96x384xbf16>, vector<16x384xf32> -> vector<16x384xf32>
    %c0_3 = arith.constant 0 : index
    %c0_4 = arith.constant 0 : index
    %3 = vector.load %arg2[%c0_3, %c0_4] : memref<16x1xf32, #tpu.memory_space<vmem>>, vector<16x1xf32>
    %4 = vector.broadcast %3 : vector<16x1xf32> to vector<16x384xf32>
    %5 = arith.addf %2, %4 : vector<16x384xf32>
    %6 = vector.extract_strided_slice %5 {offsets = [0, 0], sizes = [8, 384], strides = [1, 1]} : vector<16x384xf32> to vector<8x384xf32>
    %7 = vector.extract_strided_slice %5 {offsets = [8, 0], sizes = [8, 384], strides = [1, 1]} : vector<16x384xf32> to vector<8x384xf32>
    %8 = arith.negf %7 : vector<8x384xf32>
    %9 = math.exp %8 : vector<8x384xf32>
    %cst_5 = arith.constant 1.000000e+00 : f32
    %10 = vector.broadcast %cst_5 : f32 to vector<8x384xf32>
    %11 = arith.addf %10, %9 : vector<8x384xf32>
    %12 = arith.divf %10, %11 : vector<8x384xf32>
    %13 = arith.mulf %12, %6 : vector<8x384xf32>
    %14 = arith.negf %13 : vector<8x384xf32>
    %15 = math.exp %14 : vector<8x384xf32>
    %cst_6 = arith.constant 1.000000e+00 : f32
    %16 = vector.broadcast %cst_6 : f32 to vector<8x384xf32>
    %17 = arith.addf %16, %15 : vector<8x384xf32>
    %18 = arith.divf %16, %17 : vector<8x384xf32>
    %c0_7 = arith.constant 0 : index
    %c0_8 = arith.constant 0 : index
    %19 = vector.load %arg4[%c0_7, %c0_8] : memref<8x384xf32, #tpu.memory_space<vmem>>, vector<8x384xf32>
    tpu.vector_store %arg4[%c0_7, %c0_8], %18 {strides = array<i32>} : memref<8x384xf32, #tpu.memory_space<vmem>>, vector<8x384xf32>,
    return
  }
  func.func @transform_0(%arg0: i32) -> (i32, i32) {
    %c0_i32 = arith.constant 0 : i32
    %c0_i32_0 = arith.constant 0 : i32
    %c0_i32_1 = arith.constant 0 : i32
    return %c0_i32, %c0_i32_0 : i32, i32
  }
  func.func @transform_1(%arg0: i32) -> (i32, i32) {
    %c0_i32 = arith.constant 0 : i32
    %c0_i32_0 = arith.constant 0 : i32
    %c0_i32_1 = arith.constant 0 : i32
    return %c0_i32, %c0_i32_0 : i32, i32
  }
  func.func @transform_2(%arg0: i32) -> (i32, i32) {
    %c0_i32 = arith.constant 0 : i32
    %c0_i32_0 = arith.constant 0 : i32
    return %c0_i32, %arg0 : i32, i32
  }
  func.func @transform_3(%arg0: i32) -> (i32, i32) {
    %c0_i32 = arith.constant 0 : i32
    %c0_i32_0 = arith.constant 0 : i32
    return %c0_i32, %arg0 : i32, i32
  }
}

</mosaic_0001>

<llo_original>
// kernel: _lambda_.6
$region0: #{_lambda_.6}
  #allocation0 [shape = 'u32[]', space=smem, size = 0x4, offset = 0x4, fixed_abs, tag = 'smem constant byte address 0x4 - core index']
  #allocation1 [shape = 'u32[72,128]{1,0:T(1,128)}', space=vmem, size = 0x9000, scoped, tag = 'internal scratch']
  %s0 = inlined_call_operand.vmem [shape: bf16[16,16], index: 0, kind: input, shape index: {}]
  %s1 = inlined_call_operand.vmem [shape: f32[16,1], index: 1, kind: input, shape index: {}]
  %s2 = inlined_call_operand.vmem [shape: bf16[16,256], index: 2, kind: input, shape index: {}]
  %s3 = inlined_call_operand.vmem [shape: f32[8,256], index: 3, kind: output, shape index: {}]
  %s4 = sld [smem:[#allocation0]]
  $region22: #{_lambda_.6} parent=0
    _
  %s6 = ssub.s32 1, %s4
  %s7 = scalar_select 0, %s6, %s4
  // Predicated region
  $region2: #{_lambda_.6} parent=0 // pred_check
    _
  $region3: #{_lambda_.6} parent=0 // pred_check_branch
    %9 = sbr.rel (0) target = $region5
  $region4: #{_lambda_.6} parent=0 // pred_region
    _
  $region5: #{_lambda_.6} parent=0 // pred_fallthru
    _
  // Predicated region
  $region6: #{_lambda_.6} parent=0 // pred_check
    _
  $region7: #{_lambda_.6} parent=0 // pred_check_branch
    %11 = sbr.rel (0) target = $region9
  $region8: #{_lambda_.6} parent=0 // pred_region
    _
  $region9: #{_lambda_.6} parent=0 // pred_fallthru
    _
  // Predicated region
  $region10: #{_lambda_.6} parent=0 // pred_check
    _
  $region11: #{_lambda_.6} parent=0 // pred_check_branch
    %13 = sbr.rel (0) target = $region13
  $region12: #{_lambda_.6} parent=0 // pred_region
    _
  $region13: #{_lambda_.6} parent=0 // pred_fallthru
    _
  %v15 = vld [vmem:[%s0] sm:$0xf]
  %v16 = vld [vmem:[%s0 + $0x4] sm:$0xf]
  %v17 = vld [vmem:[%s2] sm:$0xff]
  %v18 = vld [vmem:[%s2 + $0x8] sm:$0xff]
  %v19 = vld [vmem:[%s1] sm:$0xff]
  %v20 = vld [vmem:[%s1 + $0x8] sm:$0xff]
  %22 = vset.pattern.permute.xlu0 0
  %23 = vperm.xlu0 %22, %v19
  %v24 = vpop.permute.xlu0 %23
  %27 = vset.pattern.permute.xlu0 0
  %28 = vperm.xlu0 %27, %v20
  %v29 = vpop.permute.xlu0 %28
  %v33 = vunpack.c.l.b16 %v15
  %v34 = vunpack.c.l.b16 %v16
  %v35 = vpack.c.b16 %v34, %v33
  %v38 = vunpack.c.l.b16 %v17
  %v39 = vunpack.c.h.b16 %v17
  %v40 = vunpack.c.l.b16 %v18
  %v41 = vunpack.c.h.b16 %v18
  %v42 = vpack.c.b16 %v40, %v38
  %v43 = vpack.c.b16 %v41, %v39
  %vm46 = vcmask 130048
  %v48 = vsel %vm46, %v35, 0
  %50 = vmatpush.bf16.msra.mxu0 0
  %51 = vmatpush.bf16.msra.mxu0 0
  %52 = vmatpush.bf16.msra.mxu0 0
  %53 = vmatpush.bf16.msra.mxu0 0
  %54 = vmatpush.bf16.msra.mxu0 0
  %55 = vmatpush.bf16.msra.mxu0 0
  %56 = vmatpush.bf16.msra.mxu0 0
  %57 = vmatpush.bf16.msra.mxu0 %v42
  %58 = vmatmul.bf16.gmra.mxu0 %v48
  %v59 = vpop.f32.mrf.mxu0
  %v60 = vadd.f32 %v24, %v59
  %v61 = vpop.f32.mrf.mxu0
  %v62 = vadd.f32 %v29, %v61
  %63 = vdwg.mxu0
  %64 = vmatpush.bf16.msra.mxu0 0
  %65 = vmatpush.bf16.msra.mxu0 0
  %66 = vmatpush.bf16.msra.mxu0 0
  %67 = vmatpush.bf16.msra.mxu0 0
  %68 = vmatpush.bf16.msra.mxu0 0
  %69 = vmatpush.bf16.msra.mxu0 0
  %70 = vmatpush.bf16.msra.mxu0 0
  %71 = vmatpush.bf16.msra.mxu0 %v43
  %72 = vmatmul.bf16.gmra.mxu0 %v48
  %v73 = vpop.f32.mrf.mxu0
  %v74 = vadd.f32 %v24, %v73
  %v75 = vpop.f32.mrf.mxu0
  %v76 = vadd.f32 %v29, %v75
  %77 = vdwg.mxu0
  %v78 = vxor.u32 %v62, 2147483648
  %v79 = vxor.u32 %v76, 2147483648
  %v80 = vmul.f32 %v78, 1.442695
  %v81 = vpow.pop %v80
  %v82 = vmul.f32 %v79, 1.442695
  %v83 = vpow.pop %v82
  %v84 = vadd.f32 %v81, 1.0
  %v85 = vadd.f32 %v83, 1.0
  %v86 = vrcp.pop %v84
  %v87 = vmul.f32 %v84, %v86
  %v88 = vsub.f32 1.0, %v87
  %v89 = vmul.f32 %v86, %v88
  %v90 = vadd.f32 %v86, %v89
  %vm91 = vweird.f32 %v84
  %vm92 = vweird.f32 %v86
  %vm93 = vmor %vm91, %vm92
  %v94 = vsel %vm93, %v86, %v90
  %v95 = vand.u32 2147483647, %v84
  %vm96 = vcmp.eq.f32.partialorder %v95, 8.507059e+37
  %v97 = vand.u32 %v84, 2147483648
  %v98 = vor.u32 1.1754944e-38, %v97
  %v99 = vsel %vm96, %v98, %v94
  %v100 = vmul.f32 1.0, %v99
  %v101 = vrcp.pop %v85
  %v102 = vmul.f32 %v85, %v101
  %v103 = vsub.f32 1.0, %v102
  %v104 = vmul.f32 %v101, %v103
  %v105 = vadd.f32 %v101, %v104
  %vm106 = vweird.f32 %v85
  %vm107 = vweird.f32 %v101
  %vm108 = vmor %vm106, %vm107
  %v109 = vsel %vm108, %v101, %v105
  %v110 = vand.u32 2147483647, %v85
  %vm111 = vcmp.eq.f32.partialorder %v110, 8.507059e+37
  %v112 = vand.u32 %v85, 2147483648
  %v113 = vor.u32 1.1754944e-38, %v112
  %v114 = vsel %vm111, %v113, %v109
  %v115 = vmul.f32 1.0, %v114
  %v116 = vmul.f32 %v100, %v60
  %v117 = vmul.f32 %v115, %v74
  %vm118 = vcmp.gt.f32.partialorder %v116, 0.0
  %vm119 = vcmp.gt.f32.partialorder %v117, 0.0
  %v120 = vmin.f32 %v116, 0.0
  %v121 = vmin.f32 %v117, 0.0
  %v122 = vmul.f32 %v120, 1.442695
  %v123 = vpow.pop %v122
  %v124 = vmul.f32 %v121, 1.442695
  %v125 = vpow.pop %v124
  %v126 = vsub.f32 %v123, 1.0
  %v127 = vsub.f32 %v125, 1.0
  %v128 = vsel %vm118, %v116, %v126
  %v129 = vsel %vm119, %v117, %v127
  %130 = vst [vmem:[%s3] sm:$0xff] %v128
  %131 = vst [vmem:[%s3 + $0x8] sm:$0xff] %v129
  // Predicated region
  $region14: #{_lambda_.6} parent=0 // pred_check
    _
  $region15: #{_lambda_.6} parent=0 // pred_check_branch
    %133 = sbr.rel (0) target = $region17
  $region16: #{_lambda_.6} parent=0 // pred_region
    _
  $region17: #{_lambda_.6} parent=0 // pred_fallthru
    _
  // Predicated region
  $region18: #{_lambda_.6} parent=0 // pred_check
    _
  $region19: #{_lambda_.6} parent=0 // pred_check_branch
    %135 = sbr.rel (0) target = $region21
  $region20: #{_lambda_.6} parent=0 // pred_region
    _
  $region21: #{_lambda_.6} parent=0 // pred_fallthru
    _

// kernel: _lambda_.7
$region0: #{_lambda_.7}
  #allocation0 [shape = 'u32[]', space=smem, size = 0x4, offset = 0x4, fixed_abs, tag = 'smem constant byte address 0x4 - core index']
  #allocation1 [shape = 'u32[72,128]{1,0:T(1,128)}', space=vmem, size = 0x9000, scoped, tag = 'internal scratch']
  %s0 = inlined_call_operand.vmem [shape: bf16[32,48], index: 0, kind: input, shape index: {}]
  %s1 = inlined_call_operand.vmem [shape: f32[32,1], index: 1, kind: input, shape index: {}]
  %s2 = inlined_call_operand.vmem [shape: bf16[48,128], index: 2, kind: input, shape index: {}]
  %s3 = inlined_call_operand.vmem [shape: f32[16,128], index: 3, kind: output, shape index: {}]
  %s4 = sld [smem:[#allocation0]]
  $region22: #{_lambda_.7} parent=0
    _
  %s6 = ssub.s32 1, %s4
  %s7 = scalar_select 0, %s6, %s4
  // Predicated region
  $region2: #{_lambda_.7} parent=0 // pred_check
    _
  $region3: #{_lambda_.7} parent=0 // pred_check_branch
    %9 = sbr.rel (0) target = $region5
  $region4: #{_lambda_.7} parent=0 // pred_region
    _
  $region5: #{_lambda_.7} parent=0 // pred_fallthru
    _
  // Predicated region
  $region6: #{_lambda_.7} parent=0 // pred_check
    _
  $region7: #{_lambda_.7} parent=0 // pred_check_branch
    %11 = sbr.rel (0) target = $region9
  $region8: #{_lambda_.7} parent=0 // pred_region
    _
  $region9: #{_lambda_.7} parent=0 // pred_fallthru
    _
  // Predicated region
  $region10: #{_lambda_.7} parent=0 // pred_check
    _
  $region11: #{_lambda_.7} parent=0 // pred_check_branch
    %13 = sbr.rel (0) target = $region13
  $region12: #{_lambda_.7} parent=0 // pred_region
    _
  $region13: #{_lambda_.7} parent=0 // pred_fallthru
    _
  %v15 = vld [vmem:[%s0] sm:$0xf]
  %v16 = vld [vmem:[%s0 + $0x4] sm:$0xf]
  %v17 = vld [vmem:[%s0 + $0x8] sm:$0xf]
  %v18 = vld [vmem:[%s0 + $0xc] sm:$0xf]
  %v19 = vld [vmem:[%s2] sm:$0xf]
  %v20 = vld [vmem:[%s2 + $0x4] sm:$0xf]
  %v21 = vld [vmem:[%s2 + $0x8] sm:$0xf]
  %v22 = vld [vmem:[%s2 + $0xc] sm:$0xf]
  %v23 = vld [vmem:[%s2 + $0x10] sm:$0xf]
  %v24 = vld [vmem:[%s2 + $0x14] sm:$0xf]
  %v25 = vld [vmem:[%s1] sm:$0xff]
  %v26 = vld [vmem:[%s1 + $0x8] sm:$0xff]
  %v27 = vld [vmem:[%s1 + $0x10] sm:$0xff]
  %v28 = vld [vmem:[%s1 + $0x18] sm:$0xff]
  %30 = vset.pattern.permute.xlu0 0
  %31 = vperm.xlu0 %30, %v25
  %v32 = vpop.permute.xlu0 %31
  %35 = vset.pattern.permute.xlu0 0
  %36 = vperm.xlu0 %35, %v26
  %v37 = vpop.permute.xlu0 %36
  %40 = vset.pattern.permute.xlu0 0
  %41 = vperm.xlu0 %40, %v27
  %v42 = vpop.permute.xlu0 %41
  %45 = vset.pattern.permute.xlu0 0
  %46 = vperm.xlu0 %45, %v28
  %v47 = vpop.permute.xlu0 %46
  %v53 = vunpack.c.l.b16 %v15
  %v54 = vunpack.c.l.b16 %v16
  %v55 = vunpack.c.l.b16 %v17
  %v56 = vunpack.c.l.b16 %v18
  %v57 = vpack.c.b16 %v54, %v53
  %v58 = vpack.c.b16 %v56, %v55
  %v65 = vunpack.c.l.b16 %v19
  %v66 = vunpack.c.l.b16 %v20
  %v67 = vunpack.c.l.b16 %v21
  %v68 = vunpack.c.l.b16 %v22
  %v69 = vunpack.c.l.b16 %v23
  %v70 = vunpack.c.l.b16 %v24
  %v71 = vpack.c.b16 %v66, %v65
  %v72 = vpack.c.b16 %v68, %v67
  %v73 = vpack.c.b16 %v70, %v69
  %vm77 = vcmask 392192
  %v79 = vsel %vm77, %v57, 0
  %v82 = vsel %vm77, %v58, 0
  %84 = vmatpush.bf16.msra.mxu0 0
  %85 = vmatpush.bf16.msra.mxu0 0
  %86 = vmatpush.bf16.msra.mxu0 0
  %87 = vmatpush.bf16.msra.mxu0 0
  %88 = vmatpush.bf16.msra.mxu0 0
  %89 = vmatpush.bf16.msra.mxu0 %v73
  %90 = vmatpush.bf16.msra.mxu0 %v72
  %91 = vmatpush.bf16.msra.mxu0 %v71
  %92 = vmatmul.bf16.gmra.mxu0 %v79
  %v93 = vpop.f32.mrf.mxu0
  %v94 = vadd.f32 %v32, %v93
  %v95 = vpop.f32.mrf.mxu0
  %v96 = vadd.f32 %v37, %v95
  %97 = vmatmul.bf16.gmra.mxu0 %v82
  %v98 = vpop.f32.mrf.mxu0
  %v99 = vadd.f32 %v42, %v98
  %v100 = vpop.f32.mrf.mxu0
  %v101 = vadd.f32 %v47, %v100
  %102 = vdwg.mxu0
  %v103 = vxor.u32 %v99, 2147483648
  %v104 = vxor.u32 %v101, 2147483648
  %v105 = vmul.f32 %v103, 1.442695
  %v106 = vpow.pop %v105
  %v107 = vmul.f32 %v104, 1.442695
  %v108 = vpow.pop %v107
  %v109 = vadd.f32 %v106, 1.0
  %v110 = vadd.f32 %v108, 1.0
  %v111 = vrcp.pop %v109
  %v112 = vmul.f32 %v109, %v111
  %v113 = vsub.f32 1.0, %v112
  %v114 = vmul.f32 %v111, %v113
  %v115 = vadd.f32 %v111, %v114
  %vm116 = vweird.f32 %v109
  %vm117 = vweird.f32 %v111
  %vm118 = vmor %vm116, %vm117
  %v119 = vsel %vm118, %v111, %v115
  %v120 = vand.u32 2147483647, %v109
  %vm121 = vcmp.eq.f32.partialorder %v120, 8.507059e+37
  %v122 = vand.u32 %v109, 2147483648
  %v123 = vor.u32 1.1754944e-38, %v122
  %v124 = vsel %vm121, %v123, %v119
  %v125 = vmul.f32 1.0, %v124
  %v126 = vrcp.pop %v110
  %v127 = vmul.f32 %v110, %v126
  %v128 = vsub.f32 1.0, %v127
  %v129 = vmul.f32 %v126, %v128
  %v130 = vadd.f32 %v126, %v129
  %vm131 = vweird.f32 %v110
  %vm132 = vweird.f32 %v126
  %vm133 = vmor %vm131, %vm132
  %v134 = vsel %vm133, %v126, %v130
  %v135 = vand.u32 2147483647, %v110
  %vm136 = vcmp.eq.f32.partialorder %v135, 8.507059e+37
  %v137 = vand.u32 %v110, 2147483648
  %v138 = vor.u32 1.1754944e-38, %v137
  %v139 = vsel %vm136, %v138, %v134
  %v140 = vmul.f32 1.0, %v139
  %v141 = vmul.f32 %v125, %v94
  %v142 = vmul.f32 %v140, %v96
  %vm143 = vcmp.gt.f32.partialorder %v141, 0.0
  %vm144 = vcmp.gt.f32.partialorder %v142, 0.0
  %v145 = vmin.f32 %v141, 0.0
  %v146 = vmin.f32 %v142, 0.0
  %v147 = vmul.f32 %v145, 1.442695
  %v148 = vpow.pop %v147
  %v149 = vmul.f32 %v146, 1.442695
  %v150 = vpow.pop %v149
  %v151 = vsub.f32 %v148, 1.0
  %v152 = vsub.f32 %v150, 1.0
  %v153 = vsel %vm143, %v141, %v151
  %v154 = vsel %vm144, %v142, %v152
  %155 = vst [vmem:[%s3] sm:$0xff] %v153
  %156 = vst [vmem:[%s3 + $0x8] sm:$0xff] %v154
  // Predicated region
  $region14: #{_lambda_.7} parent=0 // pred_check
    _
  $region15: #{_lambda_.7} parent=0 // pred_check_branch
    %158 = sbr.rel (0) target = $region17
  $region16: #{_lambda_.7} parent=0 // pred_region
    _
  $region17: #{_lambda_.7} parent=0 // pred_fallthru
    _
  // Predicated region
  $region18: #{_lambda_.7} parent=0 // pred_check
    _
  $region19: #{_lambda_.7} parent=0 // pred_check_branch
    %160 = sbr.rel (0) target = $region21
  $region20: #{_lambda_.7} parent=0 // pred_region
    _
  $region21: #{_lambda_.7} parent=0 // pred_fallthru
    _

// kernel: _lambda_.8
$region0: #{_lambda_.8}
  #allocation0 [shape = 'u32[]', space=smem, size = 0x4, offset = 0x4, fixed_abs, tag = 'smem constant byte address 0x4 - core index']
  #allocation1 [shape = 'u32[72,128]{1,0:T(1,128)}', space=vmem, size = 0x9000, scoped, tag = 'internal scratch']
  #allocation2 [shape = 'f32[2,2,128]{2,1,0:T(2,128)}', space=vmem, size = 0x800, scoped, tag = 'scratch operand']
  %s0 = inlined_call_operand.vmem [shape: bf16[8,2,128], index: 0, kind: input, shape index: {}]
  %s1 = inlined_call_operand.vmem [shape: bf16[2,128,384], index: 1, kind: input, shape index: {}]
  %s2 = inlined_call_operand.vmem [shape: f32[2,1,384], index: 2, kind: input, shape index: {}]
  %s3 = inlined_call_operand.vmem [shape: bf16[2,128,384], index: 3, kind: input, shape index: {}]
  %s4 = inlined_call_operand.vmem [shape: f32[2,1,384], index: 4, kind: input, shape index: {}]
  %s5 = inlined_call_operand.vmem [shape: f32[8,2,128], index: 5, kind: output, shape index: {}]
  %s6 = sld [smem:[#allocation0]]
  $region37: #{_lambda_.8} parent=0
    _
  %s8 = ssub.s32 1, %s6
  %s9 = scalar_select 0, %s8, %s6
  // Predicated region
  $region2: #{_lambda_.8} parent=0 // pred_check
    _
  $region3: #{_lambda_.8} parent=0 // pred_check_branch
    %11 = sbr.rel (0) target = $region5
  $region4: #{_lambda_.8} parent=0 // pred_region
    _
  $region5: #{_lambda_.8} parent=0 // pred_fallthru
    _
  // Predicated region
  $region6: #{_lambda_.8} parent=0 // pred_check
    _
  $region7: #{_lambda_.8} parent=0 // pred_check_branch
    %13 = sbr.rel (0) target = $region9
  $region8: #{_lambda_.8} parent=0 // pred_region
    _
  $region9: #{_lambda_.8} parent=0 // pred_fallthru
    _
  // Predicated region
  $region10: #{_lambda_.8} parent=0 // pred_check
    _
  $region11: #{_lambda_.8} parent=0 // pred_check_branch
    %15 = sbr.rel (0) target = $region13
  $region12: #{_lambda_.8} parent=0 // pred_region
    _
  $region13: #{_lambda_.8} parent=0 // pred_fallthru
    _
  // Predicated region
  $region14: #{_lambda_.8} parent=0 // pred_check
    _
  $region15: #{_lambda_.8} parent=0 // pred_check_branch
    %17 = sbr.rel (0) target = $region17
  $region16: #{_lambda_.8} parent=0 // pred_region
    _
  $region17: #{_lambda_.8} parent=0 // pred_fallthru
    _
  // Predicated region
  $region18: #{_lambda_.8} parent=0 // pred_check
    _
  $region19: #{_lambda_.8} parent=0 // pred_check_branch
    %19 = sbr.rel (0) target = $region21
  $region20: #{_lambda_.8} parent=0 // pred_region
    _
  $region21: #{_lambda_.8} parent=0 // pred_fallthru
    _
  %20 = vst [vmem:[#allocation2] sm:$0x3] 0.0
  %21 = vst [vmem:[#allocation2 + $0x2] sm:$0x3] 0.0
  loop: start=0, step=1, limit=8
  $region22: #{_lambda_.8} parent=0 // loop_pre_header
    _
  $region23: #{_lambda_.8} parent=0 // loop_header
    %s23 = sphi 0, %s27
    %p24 = scmp.ge.s32.totalorder %s23, 8
  $region24: #{_lambda_.8} parent=0 // loop_header_branch
    %26 = sbr.rel (%p24) target = $region28
  $region25: #{_lambda_.8} parent=0 // loop_body
    %s28 = scalar_lea.vmem %s0, %s23
    %v29 = vld [vmem:[%s28] sm:$0x1]
    %v30 = vld [vmem:[#allocation2] sm:$0x3]
    %v31 = vld [vmem:[%s1] sm:$0xff]
    %v32 = vld [vmem:[%s1 + $0x8] sm:$0xf]
    %v33 = vld [vmem:[%s1 + $0xc] sm:$0xff]
    %v34 = vld [vmem:[%s1 + $0x14] sm:$0xf]
    %v35 = vld [vmem:[%s1 + $0x18] sm:$0xff]
    %v36 = vld [vmem:[%s1 + $0x20] sm:$0xf]
    %v37 = vld [vmem:[%s1 + $0x24] sm:$0xff]
    %v38 = vld [vmem:[%s1 + $0x2c] sm:$0xf]
    %v39 = vld [vmem:[%s1 + $0x30] sm:$0xff]
    %v40 = vld [vmem:[%s1 + $0x38] sm:$0xf]
    %v41 = vld [vmem:[%s1 + $0x3c] sm:$0xff]
    %v42 = vld [vmem:[%s1 + $0x44] sm:$0xf]
    %v43 = vld [vmem:[%s1 + $0x48] sm:$0xff]
    %v44 = vld [vmem:[%s1 + $0x50] sm:$0xf]
    %v45 = vld [vmem:[%s1 + $0x54] sm:$0xff]
    %v46 = vld [vmem:[%s1 + $0x5c] sm:$0xf]
    %v47 = vld [vmem:[%s1 + $0x60] sm:$0xff]
    %v48 = vld [vmem:[%s1 + $0x68] sm:$0xf]
    %v49 = vld [vmem:[%s1 + $0x6c] sm:$0xff]
    %v50 = vld [vmem:[%s1 + $0x74] sm:$0xf]
    %v51 = vld [vmem:[%s1 + $0x78] sm:$0xff]
    %v52 = vld [vmem:[%s1 + $0x80] sm:$0xf]
    %v53 = vld [vmem:[%s1 + $0x84] sm:$0xff]
    %v54 = vld [vmem:[%s1 + $0x8c] sm:$0xf]
    %v55 = vld [vmem:[%s1 + $0x90] sm:$0xff]
    %v56 = vld [vmem:[%s1 + $0x98] sm:$0xf]
    %v57 = vld [vmem:[%s1 + $0x9c] sm:$0xff]
    %v58 = vld [vmem:[%s1 + $0xa4] sm:$0xf]
    %v59 = vld [vmem:[%s1 + $0xa8] sm:$0xff]
    %v60 = vld [vmem:[%s1 + $0xb0] sm:$0xf]
    %v61 = vld [vmem:[%s1 + $0xb4] sm:$0xff]
    %v62 = vld [vmem:[%s1 + $0xbc] sm:$0xf]
    %v63 = vld [vmem:[%s2] sm:$0x7]
    %v65 = vperm.slane %v63, 0
    %v66 = vperm.slane %v63, 1
    %v67 = vperm.slane %v63, 2
    %v103 = vunpack.c.l.b16 %v31
    %v104 = vunpack.c.h.b16 %v31
    %v105 = vunpack.c.l.b16 %v32
    %v106 = vunpack.c.l.b16 %v33
    %v107 = vunpack.c.h.b16 %v33
    %v108 = vunpack.c.l.b16 %v34
    %v109 = vunpack.c.l.b16 %v35
    %v110 = vunpack.c.h.b16 %v35
    %v111 = vunpack.c.l.b16 %v36
    %v112 = vunpack.c.l.b16 %v37
    %v113 = vunpack.c.h.b16 %v37
    %v114 = vunpack.c.l.b16 %v38
    %v115 = vunpack.c.l.b16 %v39
    %v116 = vunpack.c.h.b16 %v39
    %v117 = vunpack.c.l.b16 %v40
    %v118 = vunpack.c.l.b16 %v41
    %v119 = vunpack.c.h.b16 %v41
    %v120 = vunpack.c.l.b16 %v42
    %v121 = vunpack.c.l.b16 %v43
    %v122 = vunpack.c.h.b16 %v43
    %v123 = vunpack.c.l.b16 %v44
    %v124 = vunpack.c.l.b16 %v45
    %v125 = vunpack.c.h.b16 %v45
    %v126 = vunpack.c.l.b16 %v46
    %v127 = vunpack.c.l.b16 %v47
    %v128 = vunpack.c.h.b16 %v47
    %v129 = vunpack.c.l.b16 %v48
    %v130 = vunpack.c.l.b16 %v49
    %v131 = vunpack.c.h.b16 %v49
    %v132 = vunpack.c.l.b16 %v50
    %v133 = vunpack.c.l.b16 %v51
    %v134 = vunpack.c.h.b16 %v51
    %v135 = vunpack.c.l.b16 %v52
    %v136 = vunpack.c.l.b16 %v53
    %v137 = vunpack.c.h.b16 %v53
    %v138 = vunpack.c.l.b16 %v54
    %v139 = vunpack.c.l.b16 %v55
    %v140 = vunpack.c.h.b16 %v55
    %v141 = vunpack.c.l.b16 %v56
    %v142 = vunpack.c.l.b16 %v57
    %v143 = vunpack.c.h.b16 %v57
    %v144 = vunpack.c.l.b16 %v58
    %v145 = vunpack.c.l.b16 %v59
    %v146 = vunpack.c.h.b16 %v59
    %v147 = vunpack.c.l.b16 %v60
    %v148 = vunpack.c.l.b16 %v61
    %v149 = vunpack.c.h.b16 %v61
    %v150 = vunpack.c.l.b16 %v62
    %v151 = vpack.c.b16 %v106, %v103
    %v152 = vpack.c.b16 %v107, %v104
    %v153 = vpack.c.b16 %v108, %v105
    %v154 = vpack.c.b16 %v112, %v109
    %v155 = vpack.c.b16 %v113, %v110
    %v156 = vpack.c.b16 %v114, %v111
    %v157 = vpack.c.b16 %v118, %v115
    %v158 = vpack.c.b16 %v119, %v116
    %v159 = vpack.c.b16 %v120, %v117
    %v160 = vpack.c.b16 %v124, %v121
    %v161 = vpack.c.b16 %v125, %v122
    %v162 = vpack.c.b16 %v126, %v123
    %v163 = vpack.c.b16 %v130, %v127
    %v164 = vpack.c.b16 %v131, %v128
    %v165 = vpack.c.b16 %v132, %v129
    %v166 = vpack.c.b16 %v136, %v133
    %v167 = vpack.c.b16 %v137, %v134
    %v168 = vpack.c.b16 %v138, %v135
    %v169 = vpack.c.b16 %v142, %v139
    %v170 = vpack.c.b16 %v143, %v140
    %v171 = vpack.c.b16 %v144, %v141
    %v172 = vpack.c.b16 %v148, %v145
    %v173 = vpack.c.b16 %v149, %v146
    %v174 = vpack.c.b16 %v150, %v147
    %199 = vmatpush.bf16.msra.mxu0 %v172
    %200 = vmatpush.bf16.msra.mxu0 %v169
    %201 = vmatpush.bf16.msra.mxu0 %v166
    %202 = vmatpush.bf16.msra.mxu0 %v163
    %203 = vmatpush.bf16.msra.mxu0 %v160
    %204 = vmatpush.bf16.msra.mxu0 %v157
    %205 = vmatpush.bf16.msra.mxu0 %v154
    %206 = vmatpush.bf16.msra.mxu0 %v151
    %207 = vmatmul.bf16.gmra.mxu0 %v29
    %v208 = vpop.f32.mrf.mxu0
    %v209 = vadd.f32 %v65, %v208
    %v210 = vpop.f32.mrf.mxu0
    %211 = vdwg.mxu0
    %212 = vmatpush.bf16.msra.mxu0 %v173
    %213 = vmatpush.bf16.msra.mxu0 %v170
    %214 = vmatpush.bf16.msra.mxu0 %v167
    %215 = vmatpush.bf16.msra.mxu0 %v164
    %216 = vmatpush.bf16.msra.mxu0 %v161
    %217 = vmatpush.bf16.msra.mxu0 %v158
    %218 = vmatpush.bf16.msra.mxu0 %v155
    %219 = vmatpush.bf16.msra.mxu0 %v152
    %220 = vmatmul.bf16.gmra.mxu0 %v29
    %v221 = vpop.f32.mrf.mxu0
    %v222 = vadd.f32 %v66, %v221
    %v223 = vpop.f32.mrf.mxu0
    %224 = vdwg.mxu0
    %225 = vmatpush.bf16.msra.mxu0 %v174
    %226 = vmatpush.bf16.msra.mxu0 %v171
    %227 = vmatpush.bf16.msra.mxu0 %v168
    %228 = vmatpush.bf16.msra.mxu0 %v165
    %229 = vmatpush.bf16.msra.mxu0 %v162
    %230 = vmatpush.bf16.msra.mxu0 %v159
    %231 = vmatpush.bf16.msra.mxu0 %v156
    %232 = vmatpush.bf16.msra.mxu0 %v153
    %233 = vmatmul.bf16.gmra.mxu0 %v29
    %v234 = vpop.f32.mrf.mxu0
    %v235 = vadd.f32 %v67, %v234
    %v236 = vpop.f32.mrf.mxu0
    %237 = vdwg.mxu0
    %v238 = vpack.c.bf16 %v30, %v30
    %v239 = vld [vmem:[%s3] sm:$0xff]
    %v240 = vld [vmem:[%s3 + $0x8] sm:$0xf]
    %v241 = vld [vmem:[%s3 + $0xc] sm:$0xff]
    %v242 = vld [vmem:[%s3 + $0x14] sm:$0xf]
    %v243 = vld [vmem:[%s3 + $0x18] sm:$0xff]
    %v244 = vld [vmem:[%s3 + $0x20] sm:$0xf]
    %v245 = vld [vmem:[%s3 + $0x24] sm:$0xff]
    %v246 = vld [vmem:[%s3 + $0x2c] sm:$0xf]
    %v247 = vld [vmem:[%s3 + $0x30] sm:$0xff]
    %v248 = vld [vmem:[%s3 + $0x38] sm:$0xf]
    %v249 = vld [vmem:[%s3 + $0x3c] sm:$0xff]
    %v250 = vld [vmem:[%s3 + $0x44] sm:$0xf]
    %v251 = vld [vmem:[%s3 + $0x48] sm:$0xff]
    %v252 = vld [vmem:[%s3 + $0x50] sm:$0xf]
    %v253 = vld [vmem:[%s3 + $0x54] sm:$0xff]
    %v254 = vld [vmem:[%s3 + $0x5c] sm:$0xf]
    %v255 = vld [vmem:[%s3 + $0x60] sm:$0xff]
    %v256 = vld [vmem:[%s3 + $0x68] sm:$0xf]
    %v257 = vld [vmem:[%s3 + $0x6c] sm:$0xff]
    %v258 = vld [vmem:[%s3 + $0x74] sm:$0xf]
    %v259 = vld [vmem:[%s3 + $0x78] sm:$0xff]
    %v260 = vld [vmem:[%s3 + $0x80] sm:$0xf]
    %v261 = vld [vmem:[%s3 + $0x84] sm:$0xff]
    %v262 = vld [vmem:[%s3 + $0x8c] sm:$0xf]
    %v263 = vld [vmem:[%s3 + $0x90] sm:$0xff]
    %v264 = vld [vmem:[%s3 + $0x98] sm:$0xf]
    %v265 = vld [vmem:[%s3 + $0x9c] sm:$0xff]
    %v266 = vld [vmem:[%s3 + $0xa4] sm:$0xf]
    %v267 = vld [vmem:[%s3 + $0xa8] sm:$0xff]
    %v268 = vld [vmem:[%s3 + $0xb0] sm:$0xf]
    %v269 = vld [vmem:[%s3 + $0xb4] sm:$0xff]
    %v270 = vld [vmem:[%s3 + $0xbc] sm:$0xf]
    %v271 = vld [vmem:[%s4] sm:$0x7]
    %v273 = vperm.slane %v271, 0
    %v274 = vperm.slane %v271, 1
    %v275 = vperm.slane %v271, 2
    %v311 = vunpack.c.l.b16 %v239
    %v312 = vunpack.c.h.b16 %v239
    %v313 = vunpack.c.l.b16 %v240
    %v314 = vunpack.c.l.b16 %v241
    %v315 = vunpack.c.h.b16 %v241
    %v316 = vunpack.c.l.b16 %v242
    %v317 = vunpack.c.l.b16 %v243
    %v318 = vunpack.c.h.b16 %v243
    %v319 = vunpack.c.l.b16 %v244
    %v320 = vunpack.c.l.b16 %v245
    %v321 = vunpack.c.h.b16 %v245
    %v322 = vunpack.c.l.b16 %v246
    %v323 = vunpack.c.l.b16 %v247
    %v324 = vunpack.c.h.b16 %v247
    %v325 = vunpack.c.l.b16 %v248
    %v326 = vunpack.c.l.b16 %v249
    %v327 = vunpack.c.h.b16 %v249
    %v328 = vunpack.c.l.b16 %v250
    %v329 = vunpack.c.l.b16 %v251
    %v330 = vunpack.c.h.b16 %v251
    %v331 = vunpack.c.l.b16 %v252
    %v332 = vunpack.c.l.b16 %v253
    %v333 = vunpack.c.h.b16 %v253
    %v334 = vunpack.c.l.b16 %v254
    %v335 = vunpack.c.l.b16 %v255
    %v336 = vunpack.c.h.b16 %v255
    %v337 = vunpack.c.l.b16 %v256
    %v338 = vunpack.c.l.b16 %v257
    %v339 = vunpack.c.h.b16 %v257
    %v340 = vunpack.c.l.b16 %v258
    %v341 = vunpack.c.l.b16 %v259
    %v342 = vunpack.c.h.b16 %v259
    %v343 = vunpack.c.l.b16 %v260
    %v344 = vunpack.c.l.b16 %v261
    %v345 = vunpack.c.h.b16 %v261
    %v346 = vunpack.c.l.b16 %v262
    %v347 = vunpack.c.l.b16 %v263
    %v348 = vunpack.c.h.b16 %v263
    %v349 = vunpack.c.l.b16 %v264
    %v350 = vunpack.c.l.b16 %v265
    %v351 = vunpack.c.h.b16 %v265
    %v352 = vunpack.c.l.b16 %v266
    %v353 = vunpack.c.l.b16 %v267
    %v354 = vunpack.c.h.b16 %v267
    %v355 = vunpack.c.l.b16 %v268
    %v356 = vunpack.c.l.b16 %v269
    %v357 = vunpack.c.h.b16 %v269
    %v358 = vunpack.c.l.b16 %v270
    %v359 = vpack.c.b16 %v314, %v311
    %v360 = vpack.c.b16 %v315, %v312
    %v361 = vpack.c.b16 %v316, %v313
    %v362 = vpack.c.b16 %v320, %v317
    %v363 = vpack.c.b16 %v321, %v318
    %v364 = vpack.c.b16 %v322, %v319
    %v365 = vpack.c.b16 %v326, %v323
    %v366 = vpack.c.b16 %v327, %v324
    %v367 = vpack.c.b16 %v328, %v325
    %v368 = vpack.c.b16 %v332, %v329
    %v369 = vpack.c.b16 %v333, %v330
    %v370 = vpack.c.b16 %v334, %v331
    %v371 = vpack.c.b16 %v338, %v335
    %v372 = vpack.c.b16 %v339, %v336
    %v373 = vpack.c.b16 %v340, %v337
    %v374 = vpack.c.b16 %v344, %v341
    %v375 = vpack.c.b16 %v345, %v342
    %v376 = vpack.c.b16 %v346, %v343
    %v377 = vpack.c.b16 %v350, %v347
    %v378 = vpack.c.b16 %v351, %v348
    %v379 = vpack.c.b16 %v352, %v349
    %v380 = vpack.c.b16 %v356, %v353
    %v381 = vpack.c.b16 %v357, %v354
    %v382 = vpack.c.b16 %v358, %v355
    %407 = vmatpush.bf16.msra.mxu0 %v380
    %408 = vmatpush.bf16.msra.mxu0 %v377
    %409 = vmatpush.bf16.msra.mxu0 %v374
    %410 = vmatpush.bf16.msra.mxu0 %v371
    %411 = vmatpush.bf16.msra.mxu0 %v368
    %412 = vmatpush.bf16.msra.mxu0 %v365
    %413 = vmatpush.bf16.msra.mxu0 %v362
    %414 = vmatpush.bf16.msra.mxu0 %v359
    %415 = vmatmul.bf16.gmra.mxu0 %v238
    %v416 = vpop.f32.mrf.mxu0
    %v417 = vadd.f32 %v273, %v416
    %v418 = vpop.f32.mrf.mxu0
    %419 = vdwg.mxu0
    %420 = vmatpush.bf16.msra.mxu0 %v381
    %421 = vmatpush.bf16.msra.mxu0 %v378
    %422 = vmatpush.bf16.msra.mxu0 %v375
    %423 = vmatpush.bf16.msra.mxu0 %v372
    %424 = vmatpush.bf16.msra.mxu0 %v369
    %425 = vmatpush.bf16.msra.mxu0 %v366
    %426 = vmatpush.bf16.msra.mxu0 %v363
    %427 = vmatpush.bf16.msra.mxu0 %v360
    %428 = vmatmul.bf16.gmra.mxu0 %v238
    %v429 = vpop.f32.mrf.mxu0
    %v430 = vadd.f32 %v274, %v429
    %v431 = vpop.f32.mrf.mxu0
    %432 = vdwg.mxu0
    %433 = vmatpush.bf16.msra.mxu0 %v382
    %434 = vmatpush.bf16.msra.mxu0 %v379
    %435 = vmatpush.bf16.msra.mxu0 %v376
    %436 = vmatpush.bf16.msra.mxu0 %v373
    %437 = vmatpush.bf16.msra.mxu0 %v370
    %438 = vmatpush.bf16.msra.mxu0 %v367
    %439 = vmatpush.bf16.msra.mxu0 %v364
    %440 = vmatpush.bf16.msra.mxu0 %v361
    %441 = vmatmul.bf16.gmra.mxu0 %v238
    %v442 = vpop.f32.mrf.mxu0
    %v443 = vadd.f32 %v275, %v442
    %v444 = vpop.f32.mrf.mxu0
    %445 = vdwg.mxu0
    %v446 = vadd.f32 %v209, %v417
    %v447 = vxor.u32 %v446, 2147483648
    %v448 = vmul.f32 %v447, 1.442695
    %v449 = vpow.pop %v448
    %v450 = vadd.f32 %v449, 1.0
    %v451 = vrcp.pop %v450
    %v452 = vmul.f32 %v450, %v451
    %v453 = vsub.f32 1.0, %v452
    %v454 = vmul.f32 %v451, %v453
    %v455 = vadd.f32 %v451, %v454
    %vm456 = vweird.f32 %v450
    %vm457 = vweird.f32 %v451
    %vm458 = vmor %vm456, %vm457
    %v459 = vsel %vm458, %v451, %v455
    %v460 = vand.u32 2147483647, %v450
    %vm461 = vcmp.eq.f32.partialorder %v460, 8.507059e+37
    %v462 = vand.u32 %v450, 2147483648
    %v463 = vor.u32 1.1754944e-38, %v462
    %v464 = vsel %vm461, %v463, %v459
    %v465 = vmul.f32 1.0, %v464
    %v466 = vadd.f32 %v222, %v430
    %v467 = vxor.u32 %v466, 2147483648
    %v468 = vmul.f32 %v467, 1.442695
    %v469 = vpow.pop %v468
    %v470 = vadd.f32 %v469, 1.0
    %v471 = vrcp.pop %v470
    %v472 = vmul.f32 %v470, %v471
    %v473 = vsub.f32 1.0, %v472
    %v474 = vmul.f32 %v471, %v473
    %v475 = vadd.f32 %v471, %v474
    %vm476 = vweird.f32 %v470
    %vm477 = vweird.f32 %v471
    %vm478 = vmor %vm476, %vm477
    %v479 = vsel %vm478, %v471, %v475
    %v480 = vand.u32 2147483647, %v470
    %vm481 = vcmp.eq.f32.partialorder %v480, 8.507059e+37
    %v482 = vand.u32 %v470, 2147483648
    %v483 = vor.u32 1.1754944e-38, %v482
    %v484 = vsel %vm481, %v483, %v479
    %v485 = vmul.f32 1.0, %v484
    %v486 = vmul.f32 %v465, %v443
    %v487 = vadd.f32 %v235, %v486
    %v488 = vtanh.pop %v487
    %v489 = vsub.f32 1.0, %v485
    %v490 = vmul.f32 %v489, %v488
    %v491 = vmul.f32 %v485, %v30
    %v492 = vadd.f32 %v490, %v491
    %493 = vst [vmem:[#allocation2] sm:$0x3] %v492
    %v494 = vpack.c.bf16 %v492, %v492
    %s495 = scalar_lea.vmem [#allocation2], 2
    %v496 = vld [vmem:[%s495] sm:$0x3]
    %s497 = scalar_lea.vmem %s1, 192
    %v498 = vld [vmem:[%s497] sm:$0xff]
    %v499 = vld [vmem:[%s497 + $0x8] sm:$0xf]
    %v500 = vld [vmem:[%s497 + $0xc] sm:$0xff]
    %v501 = vld [vmem:[%s497 + $0x14] sm:$0xf]
    %v502 = vld [vmem:[%s497 + $0x18] sm:$0xff]
    %v503 = vld [vmem:[%s497 + $0x20] sm:$0xf]
    %v504 = vld [vmem:[%s497 + $0x24] sm:$0xff]
    %v505 = vld [vmem:[%s497 + $0x2c] sm:$0xf]
    %v506 = vld [vmem:[%s497 + $0x30] sm:$0xff]
    %v507 = vld [vmem:[%s497 + $0x38] sm:$0xf]
    %v508 = vld [vmem:[%s497 + $0x3c] sm:$0xff]
    %v509 = vld [vmem:[%s497 + $0x44] sm:$0xf]
    %v510 = vld [vmem:[%s497 + $0x48] sm:$0xff]
    %v511 = vld [vmem:[%s497 + $0x50] sm:$0xf]
    %v512 = vld [vmem:[%s497 + $0x54] sm:$0xff]
    %v513 = vld [vmem:[%s497 + $0x5c] sm:$0xf]
    %v514 = vld [vmem:[%s497 + $0x60] sm:$0xff]
    %v515 = vld [vmem:[%s497 + $0x68] sm:$0xf]
    %v516 = vld [vmem:[%s497 + $0x6c] sm:$0xff]
    %v517 = vld [vmem:[%s497 + $0x74] sm:$0xf]
    %v518 = vld [vmem:[%s497 + $0x78] sm:$0xff]
    %v519 = vld [vmem:[%s497 + $0x80] sm:$0xf]
    %v520 = vld [vmem:[%s497 + $0x84] sm:$0xff]
    %v521 = vld [vmem:[%s497 + $0x8c] sm:$0xf]
    %v522 = vld [vmem:[%s497 + $0x90] sm:$0xff]
    %v523 = vld [vmem:[%s497 + $0x98] sm:$0xf]
    %v524 = vld [vmem:[%s497 + $0x9c] sm:$0xff]
    %v525 = vld [vmem:[%s497 + $0xa4] sm:$0xf]
    %v526 = vld [vmem:[%s497 + $0xa8] sm:$0xff]
    %v527 = vld [vmem:[%s497 + $0xb0] sm:$0xf]
    %v528 = vld [vmem:[%s497 + $0xb4] sm:$0xff]
    %v529 = vld [vmem:[%s497 + $0xbc] sm:$0xf]
    %s530 = scalar_lea.vmem %s2, 3
    %v531 = vld [vmem:[%s530] sm:$0x7]
    %v533 = vperm.slane %v531, 0
    %v534 = vperm.slane %v531, 1
    %v535 = vperm.slane %v531, 2
    %v571 = vunpack.c.l.b16 %v498
    %v572 = vunpack.c.h.b16 %v498
    %v573 = vunpack.c.l.b16 %v499
    %v574 = vunpack.c.l.b16 %v500
    %v575 = vunpack.c.h.b16 %v500
    %v576 = vunpack.c.l.b16 %v501
    %v577 = vunpack.c.l.b16 %v502
    %v578 = vunpack.c.h.b16 %v502
    %v579 = vunpack.c.l.b16 %v503
    %v580 = vunpack.c.l.b16 %v504
    %v581 = vunpack.c.h.b16 %v504
    %v582 = vunpack.c.l.b16 %v505
    %v583 = vunpack.c.l.b16 %v506
    %v584 = vunpack.c.h.b16 %v506
    %v585 = vunpack.c.l.b16 %v507
    %v586 = vunpack.c.l.b16 %v508
    %v587 = vunpack.c.h.b16 %v508
    %v588 = vunpack.c.l.b16 %v509
    %v589 = vunpack.c.l.b16 %v510
    %v590 = vunpack.c.h.b16 %v510
    %v591 = vunpack.c.l.b16 %v511
    %v592 = vunpack.c.l.b16 %v512
    %v593 = vunpack.c.h.b16 %v512
    %v594 = vunpack.c.l.b16 %v513
    %v595 = vunpack.c.l.b16 %v514
    %v596 = vunpack.c.h.b16 %v514
    %v597 = vunpack.c.l.b16 %v515
    %v598 = vunpack.c.l.b16 %v516
    %v599 = vunpack.c.h.b16 %v516
    %v600 = vunpack.c.l.b16 %v517
    %v601 = vunpack.c.l.b16 %v518
    %v602 = vunpack.c.h.b16 %v518
    %v603 = vunpack.c.l.b16 %v519
    %v604 = vunpack.c.l.b16 %v520
    %v605 = vunpack.c.h.b16 %v520
    %v606 = vunpack.c.l.b16 %v521
    %v607 = vunpack.c.l.b16 %v522
    %v608 = vunpack.c.h.b16 %v522
    %v609 = vunpack.c.l.b16 %v523
    %v610 = vunpack.c.l.b16 %v524
    %v611 = vunpack.c.h.b16 %v524
    %v612 = vunpack.c.l.b16 %v525
    %v613 = vunpack.c.l.b16 %v526
    %v614 = vunpack.c.h.b16 %v526
    %v615 = vunpack.c.l.b16 %v527
    %v616 = vunpack.c.l.b16 %v528
    %v617 = vunpack.c.h.b16 %v528
    %v618 = vunpack.c.l.b16 %v529
    %v619 = vpack.c.b16 %v574, %v571
    %v620 = vpack.c.b16 %v575, %v572
    %v621 = vpack.c.b16 %v576, %v573
    %v622 = vpack.c.b16 %v580, %v577
    %v623 = vpack.c.b16 %v581, %v578
    %v624 = vpack.c.b16 %v582, %v579
    %v625 = vpack.c.b16 %v586, %v583
    %v626 = vpack.c.b16 %v587, %v584
    %v627 = vpack.c.b16 %v588, %v585
    %v628 = vpack.c.b16 %v592, %v589
    %v629 = vpack.c.b16 %v593, %v590
    %v630 = vpack.c.b16 %v594, %v591
    %v631 = vpack.c.b16 %v598, %v595
    %v632 = vpack.c.b16 %v599, %v596
    %v633 = vpack.c.b16 %v600, %v597
    %v634 = vpack.c.b16 %v604, %v601
    %v635 = vpack.c.b16 %v605, %v602
    %v636 = vpack.c.b16 %v606, %v603
    %v637 = vpack.c.b16 %v610, %v607
    %v638 = vpack.c.b16 %v611, %v608
    %v639 = vpack.c.b16 %v612, %v609
    %v640 = vpack.c.b16 %v616, %v613
    %v641 = vpack.c.b16 %v617, %v614
    %v642 = vpack.c.b16 %v618, %v615
    %667 = vmatpush.bf16.msra.mxu0 %v640
    %668 = vmatpush.bf16.msra.mxu0 %v637
    %669 = vmatpush.bf16.msra.mxu0 %v634
    %670 = vmatpush.bf16.msra.mxu0 %v631
    %671 = vmatpush.bf16.msra.mxu0 %v628
    %672 = vmatpush.bf16.msra.mxu0 %v625
    %673 = vmatpush.bf16.msra.mxu0 %v622
    %674 = vmatpush.bf16.msra.mxu0 %v619
    %675 = vmatmul.bf16.gmra.mxu0 %v494
    %v676 = vpop.f32.mrf.mxu0
    %v677 = vadd.f32 %v533, %v676
    %v678 = vpop.f32.mrf.mxu0
    %679 = vdwg.mxu0
    %680 = vmatpush.bf16.msra.mxu0 %v641
    %681 = vmatpush.bf16.msra.mxu0 %v638
    %682 = vmatpush.bf16.msra.mxu0 %v635
    %683 = vmatpush.bf16.msra.mxu0 %v632
    %684 = vmatpush.bf16.msra.mxu0 %v629
    %685 = vmatpush.bf16.msra.mxu0 %v626
    %686 = vmatpush.bf16.msra.mxu0 %v623
    %687 = vmatpush.bf16.msra.mxu0 %v620
    %688 = vmatmul.bf16.gmra.mxu0 %v494
    %v689 = vpop.f32.mrf.mxu0
    %v690 = vadd.f32 %v534, %v689
    %v691 = vpop.f32.mrf.mxu0
    %692 = vdwg.mxu0
    %693 = vmatpush.bf16.msra.mxu0 %v642
    %694 = vmatpush.bf16.msra.mxu0 %v639
    %695 = vmatpush.bf16.msra.mxu0 %v636
    %696 = vmatpush.bf16.msra.mxu0 %v633
    %697 = vmatpush.bf16.msra.mxu0 %v630
    %698 = vmatpush.bf16.msra.mxu0 %v627
    %699 = vmatpush.bf16.msra.mxu0 %v624
    %700 = vmatpush.bf16.msra.mxu0 %v621
    %701 = vmatmul.bf16.gmra.mxu0 %v494
    %v702 = vpop.f32.mrf.mxu0
    %v703 = vadd.f32 %v535, %v702
    %v704 = vpop.f32.mrf.mxu0
    %705 = vdwg.mxu0
    %v706 = vpack.c.bf16 %v496, %v496
    %s707 = scalar_lea.vmem %s3, 192
    %v708 = vld [vmem:[%s707] sm:$0xff]
    %v709 = vld [vmem:[%s707 + $0x8] sm:$0xf]
    %v710 = vld [vmem:[%s707 + $0xc] sm:$0xff]
    %v711 = vld [vmem:[%s707 + $0x14] sm:$0xf]
    %v712 = vld [vmem:[%s707 + $0x18] sm:$0xff]
    %v713 = vld [vmem:[%s707 + $0x20] sm:$0xf]
    %v714 = vld [vmem:[%s707 + $0x24] sm:$0xff]
    %v715 = vld [vmem:[%s707 + $0x2c] sm:$0xf]
    %v716 = vld [vmem:[%s707 + $0x30] sm:$0xff]
    %v717 = vld [vmem:[%s707 + $0x38] sm:$0xf]
    %v718 = vld [vmem:[%s707 + $0x3c] sm:$0xff]
    %v719 = vld [vmem:[%s707 + $0x44] sm:$0xf]
    %v720 = vld [vmem:[%s707 + $0x48] sm:$0xff]
    %v721 = vld [vmem:[%s707 + $0x50] sm:$0xf]
    %v722 = vld [vmem:[%s707 + $0x54] sm:$0xff]
    %v723 = vld [vmem:[%s707 + $0x5c] sm:$0xf]
    %v724 = vld [vmem:[%s707 + $0x60] sm:$0xff]
    %v725 = vld [vmem:[%s707 + $0x68] sm:$0xf]
    %v726 = vld [vmem:[%s707 + $0x6c] sm:$0xff]
    %v727 = vld [vmem:[%s707 + $0x74] sm:$0xf]
    %v728 = vld [vmem:[%s707 + $0x78] sm:$0xff]
    %v729 = vld [vmem:[%s707 + $0x80] sm:$0xf]
    %v730 = vld [vmem:[%s707 + $0x84] sm:$0xff]
    %v731 = vld [vmem:[%s707 + $0x8c] sm:$0xf]
    %v732 = vld [vmem:[%s707 + $0x90] sm:$0xff]
    %v733 = vld [vmem:[%s707 + $0x98] sm:$0xf]
    %v734 = vld [vmem:[%s707 + $0x9c] sm:$0xff]
    %v735 = vld [vmem:[%s707 + $0xa4] sm:$0xf]
    %v736 = vld [vmem:[%s707 + $0xa8] sm:$0xff]
    %v737 = vld [vmem:[%s707 + $0xb0] sm:$0xf]
    %v738 = vld [vmem:[%s707 + $0xb4] sm:$0xff]
    %v739 = vld [vmem:[%s707 + $0xbc] sm:$0xf]
    %s740 = scalar_lea.vmem %s4, 3
    %v741 = vld [vmem:[%s740] sm:$0x7]
    %v743 = vperm.slane %v741, 0
    %v744 = vperm.slane %v741, 1
    %v745 = vperm.slane %v741, 2
    %v781 = vunpack.c.l.b16 %v708
    %v782 = vunpack.c.h.b16 %v708
    %v783 = vunpack.c.l.b16 %v709
    %v784 = vunpack.c.l.b16 %v710
    %v785 = vunpack.c.h.b16 %v710
    %v786 = vunpack.c.l.b16 %v711
    %v787 = vunpack.c.l.b16 %v712
    %v788 = vunpack.c.h.b16 %v712
    %v789 = vunpack.c.l.b16 %v713
    %v790 = vunpack.c.l.b16 %v714
    %v791 = vunpack.c.h.b16 %v714
    %v792 = vunpack.c.l.b16 %v715
    %v793 = vunpack.c.l.b16 %v716
    %v794 = vunpack.c.h.b16 %v716
    %v795 = vunpack.c.l.b16 %v717
    %v796 = vunpack.c.l.b16 %v718
    %v797 = vunpack.c.h.b16 %v718
    %v798 = vunpack.c.l.b16 %v719
    %v799 = vunpack.c.l.b16 %v720
    %v800 = vunpack.c.h.b16 %v720
    %v801 = vunpack.c.l.b16 %v721
    %v802 = vunpack.c.l.b16 %v722
    %v803 = vunpack.c.h.b16 %v722
    %v804 = vunpack.c.l.b16 %v723
    %v805 = vunpack.c.l.b16 %v724
    %v806 = vunpack.c.h.b16 %v724
    %v807 = vunpack.c.l.b16 %v725
    %v808 = vunpack.c.l.b16 %v726
    %v809 = vunpack.c.h.b16 %v726
    %v810 = vunpack.c.l.b16 %v727
    %v811 = vunpack.c.l.b16 %v728
    %v812 = vunpack.c.h.b16 %v728
    %v813 = vunpack.c.l.b16 %v729
    %v814 = vunpack.c.l.b16 %v730
    %v815 = vunpack.c.h.b16 %v730
    %v816 = vunpack.c.l.b16 %v731
    %v817 = vunpack.c.l.b16 %v732
    %v818 = vunpack.c.h.b16 %v732
    %v819 = vunpack.c.l.b16 %v733
    %v820 = vunpack.c.l.b16 %v734
    %v821 = vunpack.c.h.b16 %v734
    %v822 = vunpack.c.l.b16 %v735
    %v823 = vunpack.c.l.b16 %v736
    %v824 = vunpack.c.h.b16 %v736
    %v825 = vunpack.c.l.b16 %v737
    %v826 = vunpack.c.l.b16 %v738
    %v827 = vunpack.c.h.b16 %v738
    %v828 = vunpack.c.l.b16 %v739
    %v829 = vpack.c.b16 %v784, %v781
    %v830 = vpack.c.b16 %v785, %v782
    %v831 = vpack.c.b16 %v786, %v783
    %v832 = vpack.c.b16 %v790, %v787
    %v833 = vpack.c.b16 %v791, %v788
    %v834 = vpack.c.b16 %v792, %v789
    %v835 = vpack.c.b16 %v796, %v793
    %v836 = vpack.c.b16 %v797, %v794
    %v837 = vpack.c.b16 %v798, %v795
    %v838 = vpack.c.b16 %v802, %v799
    %v839 = vpack.c.b16 %v803, %v800
    %v840 = vpack.c.b16 %v804, %v801
    %v841 = vpack.c.b16 %v808, %v805
    %v842 = vpack.c.b16 %v809, %v806
    %v843 = vpack.c.b16 %v810, %v807
    %v844 = vpack.c.b16 %v814, %v811
    %v845 = vpack.c.b16 %v815, %v812
    %v846 = vpack.c.b16 %v816, %v813
    %v847 = vpack.c.b16 %v820, %v817
    %v848 = vpack.c.b16 %v821, %v818
    %v849 = vpack.c.b16 %v822, %v819
    %v850 = vpack.c.b16 %v826, %v823
    %v851 = vpack.c.b16 %v827, %v824
    %v852 = vpack.c.b16 %v828, %v825
    %877 = vmatpush.bf16.msra.mxu0 %v850
    %878 = vmatpush.bf16.msra.mxu0 %v847
    %879 = vmatpush.bf16.msra.mxu0 %v844
    %880 = vmatpush.bf16.msra.mxu0 %v841
    %881 = vmatpush.bf16.msra.mxu0 %v838
    %882 = vmatpush.bf16.msra.mxu0 %v835
    %883 = vmatpush.bf16.msra.mxu0 %v832
    %884 = vmatpush.bf16.msra.mxu0 %v829
    %885 = vmatmul.bf16.gmra.mxu0 %v706
    %v886 = vpop.f32.mrf.mxu0
    %v887 = vadd.f32 %v743, %v886
    %v888 = vpop.f32.mrf.mxu0
    %889 = vdwg.mxu0
    %890 = vmatpush.bf16.msra.mxu0 %v851
    %891 = vmatpush.bf16.msra.mxu0 %v848
    %892 = vmatpush.bf16.msra.mxu0 %v845
    %893 = vmatpush.bf16.msra.mxu0 %v842
    %894 = vmatpush.bf16.msra.mxu0 %v839
    %895 = vmatpush.bf16.msra.mxu0 %v836
    %896 = vmatpush.bf16.msra.mxu0 %v833
    %897 = vmatpush.bf16.msra.mxu0 %v830
    %898 = vmatmul.bf16.gmra.mxu0 %v706
    %v899 = vpop.f32.mrf.mxu0
    %v900 = vadd.f32 %v744, %v899
    %v901 = vpop.f32.mrf.mxu0
    %902 = vdwg.mxu0
    %903 = vmatpush.bf16.msra.mxu0 %v852
    %904 = vmatpush.bf16.msra.mxu0 %v849
    %905 = vmatpush.bf16.msra.mxu0 %v846
    %906 = vmatpush.bf16.msra.mxu0 %v843
    %907 = vmatpush.bf16.msra.mxu0 %v840
    %908 = vmatpush.bf16.msra.mxu0 %v837
    %909 = vmatpush.bf16.msra.mxu0 %v834
    %910 = vmatpush.bf16.msra.mxu0 %v831
    %911 = vmatmul.bf16.gmra.mxu0 %v706
    %v912 = vpop.f32.mrf.mxu0
    %v913 = vadd.f32 %v745, %v912
    %v914 = vpop.f32.mrf.mxu0
    %915 = vdwg.mxu0
    %v916 = vadd.f32 %v677, %v887
    %v917 = vxor.u32 %v916, 2147483648
    %v918 = vmul.f32 %v917, 1.442695
    %v919 = vpow.pop %v918
    %v920 = vadd.f32 %v919, 1.0
    %v921 = vrcp.pop %v920
    %v922 = vmul.f32 %v920, %v921
    %v923 = vsub.f32 1.0, %v922
    %v924 = vmul.f32 %v921, %v923
    %v925 = vadd.f32 %v921, %v924
    %vm926 = vweird.f32 %v920
    %vm927 = vweird.f32 %v921
    %vm928 = vmor %vm926, %vm927
    %v929 = vsel %vm928, %v921, %v925
    %v930 = vand.u32 2147483647, %v920
    %vm931 = vcmp.eq.f32.partialorder %v930, 8.507059e+37
    %v932 = vand.u32 %v920, 2147483648
    %v933 = vor.u32 1.1754944e-38, %v932
    %v934 = vsel %vm931, %v933, %v929
    %v935 = vmul.f32 1.0, %v934
    %v936 = vadd.f32 %v690, %v900
    %v937 = vxor.u32 %v936, 2147483648
    %v938 = vmul.f32 %v937, 1.442695
    %v939 = vpow.pop %v938
    %v940 = vadd.f32 %v939, 1.0
    %v941 = vrcp.pop %v940
    %v942 = vmul.f32 %v940, %v941
    %v943 = vsub.f32 1.0, %v942
    %v944 = vmul.f32 %v941, %v943
    %v945 = vadd.f32 %v941, %v944
    %vm946 = vweird.f32 %v940
    %vm947 = vweird.f32 %v941
    %vm948 = vmor %vm946, %vm947
    %v949 = vsel %vm948, %v941, %v945
    %v950 = vand.u32 2147483647, %v940
    %vm951 = vcmp.eq.f32.partialorder %v950, 8.507059e+37
    %v952 = vand.u32 %v940, 2147483648
    %v953 = vor.u32 1.1754944e-38, %v952
    %v954 = vsel %vm951, %v953, %v949
    %v955 = vmul.f32 1.0, %v954
    %v956 = vmul.f32 %v935, %v913
    %v957 = vadd.f32 %v703, %v956
    %v958 = vtanh.pop %v957
    %v959 = vsub.f32 1.0, %v955
    %v960 = vmul.f32 %v959, %v958
    %v961 = vmul.f32 %v955, %v496
    %v962 = vadd.f32 %v960, %v961
    %963 = vst [vmem:[%s495] sm:$0x3] %v962
    %s964 = smul.u32 %s23, 2
    %s965 = scalar_lea.vmem %s5, %s964
    %966 = vst [vmem:[%s965] sm:$0x3] %v962
  $region26: #{_lambda_.8} parent=0 // loop_footer
    %s27 = sadd.s32 1, %s23
  $region27: #{_lambda_.8} parent=0 // loop_footer_branch
    %22 = sbr.rel target = $region23
  $region28: #{_lambda_.8} parent=0 // loop_exit
    _
  // Predicated region
  $region29: #{_lambda_.8} parent=0 // pred_check
    _
  $region30: #{_lambda_.8} parent=0 // pred_check_branch
    %968 = sbr.rel (0) target = $region32
  $region31: #{_lambda_.8} parent=0 // pred_region
    _
  $region32: #{_lambda_.8} parent=0 // pred_fallthru
    _
  // Predicated region
  $region33: #{_lambda_.8} parent=0 // pred_check
    _
  $region34: #{_lambda_.8} parent=0 // pred_check_branch
    %970 = sbr.rel (0) target = $region36
  $region35: #{_lambda_.8} parent=0 // pred_region
    _
  $region36: #{_lambda_.8} parent=0 // pred_fallthru
    _

// kernel: _lambda_.9
$region0: #{_lambda_.9}
  #allocation0 [shape = 'u32[]', space=smem, size = 0x4, offset = 0x4, fixed_abs, tag = 'smem constant byte address 0x4 - core index']
  #allocation1 [shape = 'u32[72,128]{1,0:T(1,128)}', space=vmem, size = 0x9000, scoped, tag = 'internal scratch']
  %s0 = inlined_call_operand.vmem [shape: bf16[32,192], index: 0, kind: input, shape index: {}]
  %s1 = inlined_call_operand.vmem [shape: f32[32,1], index: 1, kind: input, shape index: {}]
  %s2 = inlined_call_operand.vmem [shape: bf16[192,256], index: 2, kind: input, shape index: {}]
  %s3 = inlined_call_operand.vmem [shape: f32[16,256], index: 3, kind: output, shape index: {}]
  %s4 = sld [smem:[#allocation0]]
  $region22: #{_lambda_.9} parent=0
    _
  %s6 = ssub.s32 1, %s4
  %s7 = scalar_select 0, %s6, %s4
  // Predicated region
  $region2: #{_lambda_.9} parent=0 // pred_check
    _
  $region3: #{_lambda_.9} parent=0 // pred_check_branch
    %9 = sbr.rel (0) target = $region5
  $region4: #{_lambda_.9} parent=0 // pred_region
    _
  $region5: #{_lambda_.9} parent=0 // pred_fallthru
    _
  // Predicated region
  $region6: #{_lambda_.9} parent=0 // pred_check
    _
  $region7: #{_lambda_.9} parent=0 // pred_check_branch
    %11 = sbr.rel (0) target = $region9
  $region8: #{_lambda_.9} parent=0 // pred_region
    _
  $region9: #{_lambda_.9} parent=0 // pred_fallthru
    _
  // Predicated region
  $region10: #{_lambda_.9} parent=0 // pred_check
    _
  $region11: #{_lambda_.9} parent=0 // pred_check_branch
    %13 = sbr.rel (0) target = $region13
  $region12: #{_lambda_.9} parent=0 // pred_region
    _
  $region13: #{_lambda_.9} parent=0 // pred_fallthru
    _
  %v15 = vld [vmem:[%s0] sm:$0xff]
  %v16 = vld [vmem:[%s0 + $0x8] sm:$0xff]
  %v17 = vld [vmem:[%s0 + $0x10] sm:$0xff]
  %v18 = vld [vmem:[%s0 + $0x18] sm:$0xff]
  %v19 = vld [vmem:[%s2] sm:$0xff]
  %v20 = vld [vmem:[%s2 + $0x8] sm:$0xff]
  %v21 = vld [vmem:[%s2 + $0x10] sm:$0xff]
  %v22 = vld [vmem:[%s2 + $0x18] sm:$0xff]
  %v23 = vld [vmem:[%s2 + $0x20] sm:$0xff]
  %v24 = vld [vmem:[%s2 + $0x28] sm:$0xff]
  %v25 = vld [vmem:[%s2 + $0x30] sm:$0xff]
  %v26 = vld [vmem:[%s2 + $0x38] sm:$0xff]
  %v27 = vld [vmem:[%s2 + $0x40] sm:$0xff]
  %v28 = vld [vmem:[%s2 + $0x48] sm:$0xff]
  %v29 = vld [vmem:[%s2 + $0x50] sm:$0xff]
  %v30 = vld [vmem:[%s2 + $0x58] sm:$0xff]
  %v31 = vld [vmem:[%s2 + $0x60] sm:$0xff]
  %v32 = vld [vmem:[%s2 + $0x68] sm:$0xff]
  %v33 = vld [vmem:[%s2 + $0x70] sm:$0xff]
  %v34 = vld [vmem:[%s2 + $0x78] sm:$0xff]
  %v35 = vld [vmem:[%s2 + $0x80] sm:$0xff]
  %v36 = vld [vmem:[%s2 + $0x88] sm:$0xff]
  %v37 = vld [vmem:[%s2 + $0x90] sm:$0xff]
  %v38 = vld [vmem:[%s2 + $0x98] sm:$0xff]
  %v39 = vld [vmem:[%s2 + $0xa0] sm:$0xff]
  %v40 = vld [vmem:[%s2 + $0xa8] sm:$0xff]
  %v41 = vld [vmem:[%s2 + $0xb0] sm:$0xff]
  %v42 = vld [vmem:[%s2 + $0xb8] sm:$0xff]
  %v43 = vld [vmem:[%s1] sm:$0xff]
  %v44 = vld [vmem:[%s1 + $0x8] sm:$0xff]
  %v45 = vld [vmem:[%s1 + $0x10] sm:$0xff]
  %v46 = vld [vmem:[%s1 + $0x18] sm:$0xff]
  %48 = vset.pattern.permute.xlu0 0
  %49 = vperm.xlu0 %48, %v43
  %v50 = vpop.permute.xlu0 %49
  %53 = vset.pattern.permute.xlu0 0
  %54 = vperm.xlu0 %53, %v44
  %v55 = vpop.permute.xlu0 %54
  %58 = vset.pattern.permute.xlu0 0
  %59 = vperm.xlu0 %58, %v45
  %v60 = vpop.permute.xlu0 %59
  %63 = vset.pattern.permute.xlu0 0
  %64 = vperm.xlu0 %63, %v46
  %v65 = vpop.permute.xlu0 %64
  %v71 = vunpack.c.l.b16 %v15
  %v72 = vunpack.c.h.b16 %v15
  %v73 = vunpack.c.l.b16 %v16
  %v74 = vunpack.c.h.b16 %v16
  %v75 = vunpack.c.l.b16 %v17
  %v76 = vunpack.c.h.b16 %v17
  %v77 = vunpack.c.l.b16 %v18
  %v78 = vunpack.c.h.b16 %v18
  %v79 = vpack.c.b16 %v73, %v71
  %v80 = vpack.c.b16 %v74, %v72
  %v81 = vpack.c.b16 %v77, %v75
  %v82 = vpack.c.b16 %v78, %v76
  %v109 = vunpack.c.l.b16 %v19
  %v110 = vunpack.c.h.b16 %v19
  %v111 = vunpack.c.l.b16 %v20
  %v112 = vunpack.c.h.b16 %v20
  %v113 = vunpack.c.l.b16 %v21
  %v114 = vunpack.c.h.b16 %v21
  %v115 = vunpack.c.l.b16 %v22
  %v116 = vunpack.c.h.b16 %v22
  %v117 = vunpack.c.l.b16 %v23
  %v118 = vunpack.c.h.b16 %v23
  %v119 = vunpack.c.l.b16 %v24
  %v120 = vunpack.c.h.b16 %v24
  %v121 = vunpack.c.l.b16 %v25
  %v122 = vunpack.c.h.b16 %v25
  %v123 = vunpack.c.l.b16 %v26
  %v124 = vunpack.c.h.b16 %v26
  %v125 = vunpack.c.l.b16 %v27
  %v126 = vunpack.c.h.b16 %v27
  %v127 = vunpack.c.l.b16 %v28
  %v128 = vunpack.c.h.b16 %v28
  %v129 = vunpack.c.l.b16 %v29
  %v130 = vunpack.c.h.b16 %v29
  %v131 = vunpack.c.l.b16 %v30
  %v132 = vunpack.c.h.b16 %v30
  %v133 = vunpack.c.l.b16 %v31
  %v134 = vunpack.c.h.b16 %v31
  %v135 = vunpack.c.l.b16 %v32
  %v136 = vunpack.c.h.b16 %v32
  %v137 = vunpack.c.l.b16 %v33
  %v138 = vunpack.c.h.b16 %v33
  %v139 = vunpack.c.l.b16 %v34
  %v140 = vunpack.c.h.b16 %v34
  %v141 = vunpack.c.l.b16 %v35
  %v142 = vunpack.c.h.b16 %v35
  %v143 = vunpack.c.l.b16 %v36
  %v144 = vunpack.c.h.b16 %v36
  %v145 = vunpack.c.l.b16 %v37
  %v146 = vunpack.c.h.b16 %v37
  %v147 = vunpack.c.l.b16 %v38
  %v148 = vunpack.c.h.b16 %v38
  %v149 = vunpack.c.l.b16 %v39
  %v150 = vunpack.c.h.b16 %v39
  %v151 = vunpack.c.l.b16 %v40
  %v152 = vunpack.c.h.b16 %v40
  %v153 = vunpack.c.l.b16 %v41
  %v154 = vunpack.c.h.b16 %v41
  %v155 = vunpack.c.l.b16 %v42
  %v156 = vunpack.c.h.b16 %v42
  %v157 = vpack.c.b16 %v111, %v109
  %v158 = vpack.c.b16 %v112, %v110
  %v159 = vpack.c.b16 %v115, %v113
  %v160 = vpack.c.b16 %v116, %v114
  %v161 = vpack.c.b16 %v119, %v117
  %v162 = vpack.c.b16 %v120, %v118
  %v163 = vpack.c.b16 %v123, %v121
  %v164 = vpack.c.b16 %v124, %v122
  %v165 = vpack.c.b16 %v127, %v125
  %v166 = vpack.c.b16 %v128, %v126
  %v167 = vpack.c.b16 %v131, %v129
  %v168 = vpack.c.b16 %v132, %v130
  %v169 = vpack.c.b16 %v135, %v133
  %v170 = vpack.c.b16 %v136, %v134
  %v171 = vpack.c.b16 %v139, %v137
  %v172 = vpack.c.b16 %v140, %v138
  %v173 = vpack.c.b16 %v143, %v141
  %v174 = vpack.c.b16 %v144, %v142
  %v175 = vpack.c.b16 %v147, %v145
  %v176 = vpack.c.b16 %v148, %v146
  %v177 = vpack.c.b16 %v151, %v149
  %v178 = vpack.c.b16 %v152, %v150
  %v179 = vpack.c.b16 %v155, %v153
  %v180 = vpack.c.b16 %v156, %v154
  %vm205 = vcmask 523264
  %v207 = vsel %vm205, %v80, 0
  %v210 = vsel %vm205, %v82, 0
  %212 = vmatpush.bf16.msra.mxu0 %v171
  %213 = vmatpush.bf16.msra.mxu0 %v169
  %214 = vmatpush.bf16.msra.mxu0 %v167
  %215 = vmatpush.bf16.msra.mxu0 %v165
  %216 = vmatpush.bf16.msra.mxu0 %v163
  %217 = vmatpush.bf16.msra.mxu0 %v161
  %218 = vmatpush.bf16.msra.mxu0 %v159
  %219 = vmatpush.bf16.msra.mxu0 %v157
  %220 = vmatmul.bf16.gmra.mxu0 %v79
  %v221 = vpop.f32.mrf.mxu0
  %v222 = vadd.f32 %v50, %v221
  %v223 = vpop.f32.mrf.mxu0
  %v224 = vadd.f32 %v55, %v223
  %225 = vmatmul.bf16.gmra.mxu0 %v81
  %v226 = vpop.f32.mrf.mxu0
  %v227 = vadd.f32 %v60, %v226
  %v228 = vpop.f32.mrf.mxu0
  %v229 = vadd.f32 %v65, %v228
  %230 = vdwg.mxu0
  %231 = vmatpush.bf16.msra.mxu0 0
  %232 = vmatpush.bf16.msra.mxu0 0
  %233 = vmatpush.bf16.msra.mxu0 0
  %234 = vmatpush.bf16.msra.mxu0 0
  %235 = vmatpush.bf16.msra.mxu0 %v179
  %236 = vmatpush.bf16.msra.mxu0 %v177
  %237 = vmatpush.bf16.msra.mxu0 %v175
  %238 = vmatpush.bf16.msra.mxu0 %v173
  %239 = vmatmul.bf16.gmra.mxu0 %v207
  %v240 = vpop.f32.mrf.mxu0
  %v241 = vadd.f32 %v222, %v240
  %v242 = vpop.f32.mrf.mxu0
  %v243 = vadd.f32 %v224, %v242
  %244 = vmatmul.bf16.gmra.mxu0 %v210
  %v245 = vpop.f32.mrf.mxu0
  %v246 = vadd.f32 %v227, %v245
  %v247 = vpop.f32.mrf.mxu0
  %v248 = vadd.f32 %v229, %v247
  %249 = vdwg.mxu0
  %250 = vmatpush.bf16.msra.mxu0 %v172
  %251 = vmatpush.bf16.msra.mxu0 %v170
  %252 = vmatpush.bf16.msra.mxu0 %v168
  %253 = vmatpush.bf16.msra.mxu0 %v166
  %254 = vmatpush.bf16.msra.mxu0 %v164
  %255 = vmatpush.bf16.msra.mxu0 %v162
  %256 = vmatpush.bf16.msra.mxu0 %v160
  %257 = vmatpush.bf16.msra.mxu0 %v158
  %258 = vmatmul.bf16.gmra.mxu0 %v79
  %v259 = vpop.f32.mrf.mxu0
  %v260 = vadd.f32 %v50, %v259
  %v261 = vpop.f32.mrf.mxu0
  %v262 = vadd.f32 %v55, %v261
  %263 = vmatmul.bf16.gmra.mxu0 %v81
  %v264 = vpop.f32.mrf.mxu0
  %v265 = vadd.f32 %v60, %v264
  %v266 = vpop.f32.mrf.mxu0
  %v267 = vadd.f32 %v65, %v266
  %268 = vdwg.mxu0
  %269 = vmatpush.bf16.msra.mxu0 0
  %270 = vmatpush.bf16.msra.mxu0 0
  %271 = vmatpush.bf16.msra.mxu0 0
  %272 = vmatpush.bf16.msra.mxu0 0
  %273 = vmatpush.bf16.msra.mxu0 %v180
  %274 = vmatpush.bf16.msra.mxu0 %v178
  %275 = vmatpush.bf16.msra.mxu0 %v176
  %276 = vmatpush.bf16.msra.mxu0 %v174
  %277 = vmatmul.bf16.gmra.mxu0 %v207
  %v278 = vpop.f32.mrf.mxu0
  %v279 = vadd.f32 %v260, %v278
  %v280 = vpop.f32.mrf.mxu0
  %v281 = vadd.f32 %v262, %v280
  %282 = vmatmul.bf16.gmra.mxu0 %v210
  %v283 = vpop.f32.mrf.mxu0
  %v284 = vadd.f32 %v265, %v283
  %v285 = vpop.f32.mrf.mxu0
  %v286 = vadd.f32 %v267, %v285
  %287 = vdwg.mxu0
  %v288 = vxor.u32 %v246, 2147483648
  %v289 = vxor.u32 %v284, 2147483648
  %v290 = vxor.u32 %v248, 2147483648
  %v291 = vxor.u32 %v286, 2147483648
  %v292 = vmul.f32 %v288, 1.442695
  %v293 = vpow.pop %v292
  %v294 = vmul.f32 %v289, 1.442695
  %v295 = vpow.pop %v294
  %v296 = vmul.f32 %v290, 1.442695
  %v297 = vpow.pop %v296
  %v298 = vmul.f32 %v291, 1.442695
  %v299 = vpow.pop %v298
  %v300 = vadd.f32 %v293, 1.0
  %v301 = vadd.f32 %v295, 1.0
  %v302 = vadd.f32 %v297, 1.0
  %v303 = vadd.f32 %v299, 1.0
  %v304 = vrcp.pop %v300
  %v305 = vmul.f32 %v300, %v304
  %v306 = vsub.f32 1.0, %v305
  %v307 = vmul.f32 %v304, %v306
  %v308 = vadd.f32 %v304, %v307
  %vm309 = vweird.f32 %v300
  %vm310 = vweird.f32 %v304
  %vm311 = vmor %vm309, %vm310
  %v312 = vsel %vm311, %v304, %v308
  %v313 = vand.u32 2147483647, %v300
  %vm314 = vcmp.eq.f32.partialorder %v313, 8.507059e+37
  %v315 = vand.u32 %v300, 2147483648
  %v316 = vor.u32 1.1754944e-38, %v315
  %v317 = vsel %vm314, %v316, %v312
  %v318 = vmul.f32 1.0, %v317
  %v319 = vrcp.pop %v301
  %v320 = vmul.f32 %v301, %v319
  %v321 = vsub.f32 1.0, %v320
  %v322 = vmul.f32 %v319, %v321
  %v323 = vadd.f32 %v319, %v322
  %vm324 = vweird.f32 %v301
  %vm325 = vweird.f32 %v319
  %vm326 = vmor %vm324, %vm325
  %v327 = vsel %vm326, %v319, %v323
  %v328 = vand.u32 2147483647, %v301
  %vm329 = vcmp.eq.f32.partialorder %v328, 8.507059e+37
  %v330 = vand.u32 %v301, 2147483648
  %v331 = vor.u32 1.1754944e-38, %v330
  %v332 = vsel %vm329, %v331, %v327
  %v333 = vmul.f32 1.0, %v332
  %v334 = vrcp.pop %v302
  %v335 = vmul.f32 %v302, %v334
  %v336 = vsub.f32 1.0, %v335
  %v337 = vmul.f32 %v334, %v336
  %v338 = vadd.f32 %v334, %v337
  %vm339 = vweird.f32 %v302
  %vm340 = vweird.f32 %v334
  %vm341 = vmor %vm339, %vm340
  %v342 = vsel %vm341, %v334, %v338
  %v343 = vand.u32 2147483647, %v302
  %vm344 = vcmp.eq.f32.partialorder %v343, 8.507059e+37
  %v345 = vand.u32 %v302, 2147483648
  %v346 = vor.u32 1.1754944e-38, %v345
  %v347 = vsel %vm344, %v346, %v342
  %v348 = vmul.f32 1.0, %v347
  %v349 = vrcp.pop %v303
  %v350 = vmul.f32 %v303, %v349
  %v351 = vsub.f32 1.0, %v350
  %v352 = vmul.f32 %v349, %v351
  %v353 = vadd.f32 %v349, %v352
  %vm354 = vweird.f32 %v303
  %vm355 = vweird.f32 %v349
  %vm356 = vmor %vm354, %vm355
  %v357 = vsel %vm356, %v349, %v353
  %v358 = vand.u32 2147483647, %v303
  %vm359 = vcmp.eq.f32.partialorder %v358, 8.507059e+37
  %v360 = vand.u32 %v303, 2147483648
  %v361 = vor.u32 1.1754944e-38, %v360
  %v362 = vsel %vm359, %v361, %v357
  %v363 = vmul.f32 1.0, %v362
  %v364 = vmul.f32 %v318, %v241
  %v365 = vmul.f32 %v333, %v279
  %v366 = vmul.f32 %v348, %v243
  %v367 = vmul.f32 %v363, %v281
  %vm368 = vcmp.gt.f32.partialorder %v364, 0.0
  %vm369 = vcmp.gt.f32.partialorder %v365, 0.0
  %vm370 = vcmp.gt.f32.partialorder %v366, 0.0
  %vm371 = vcmp.gt.f32.partialorder %v367, 0.0
  %v372 = vmin.f32 %v364, 0.0
  %v373 = vmin.f32 %v365, 0.0
  %v374 = vmin.f32 %v366, 0.0
  %v375 = vmin.f32 %v367, 0.0
  %v376 = vmul.f32 %v372, 1.442695
  %v377 = vpow.pop %v376
  %v378 = vmul.f32 %v373, 1.442695
  %v379 = vpow.pop %v378
  %v380 = vmul.f32 %v374, 1.442695
  %v381 = vpow.pop %v380
  %v382 = vmul.f32 %v375, 1.442695
  %v383 = vpow.pop %v382
  %v384 = vsub.f32 %v377, 1.0
  %v385 = vsub.f32 %v379, 1.0
  %v386 = vsub.f32 %v381, 1.0
  %v387 = vsub.f32 %v383, 1.0
  %v388 = vsel %vm368, %v364, %v384
  %v389 = vsel %vm369, %v365, %v385
  %v390 = vsel %vm370, %v366, %v386
  %v391 = vsel %vm371, %v367, %v387
  %392 = vst [vmem:[%s3] sm:$0xff] %v388
  %393 = vst [vmem:[%s3 + $0x8] sm:$0xff] %v389
  %394 = vst [vmem:[%s3 + $0x10] sm:$0xff] %v390
  %395 = vst [vmem:[%s3 + $0x18] sm:$0xff] %v391
  // Predicated region
  $region14: #{_lambda_.9} parent=0 // pred_check
    _
  $region15: #{_lambda_.9} parent=0 // pred_check_branch
    %397 = sbr.rel (0) target = $region17
  $region16: #{_lambda_.9} parent=0 // pred_region
    _
  $region17: #{_lambda_.9} parent=0 // pred_fallthru
    _
  // Predicated region
  $region18: #{_lambda_.9} parent=0 // pred_check
    _
  $region19: #{_lambda_.9} parent=0 // pred_check_branch
    %399 = sbr.rel (0) target = $region21
  $region20: #{_lambda_.9} parent=0 // pred_region
    _
  $region21: #{_lambda_.9} parent=0 // pred_fallthru
    _

// kernel: _lambda_.11
$region0: #{_lambda_.11}
  #allocation0 [shape = 'u32[]', space=smem, size = 0x4, offset = 0x4, fixed_abs, tag = 'smem constant byte address 0x4 - core index']
  #allocation1 [shape = 'u32[72,128]{1,0:T(1,128)}', space=vmem, size = 0x9000, scoped, tag = 'internal scratch']
  %s0 = inlined_call_operand.vmem [shape: bf16[16,96], index: 0, kind: input, shape index: {}]
  %s1 = inlined_call_operand.vmem [shape: f32[16,1], index: 1, kind: input, shape index: {}]
  %s2 = inlined_call_operand.vmem [shape: bf16[96,384], index: 2, kind: input, shape index: {}]
  %s3 = inlined_call_operand.vmem [shape: f32[8,384], index: 3, kind: output, shape index: {}]
  %s4 = sld [smem:[#allocation0]]
  $region22: #{_lambda_.11} parent=0
    _
  %s6 = ssub.s32 1, %s4
  %s7 = scalar_select 0, %s6, %s4
  // Predicated region
  $region2: #{_lambda_.11} parent=0 // pred_check
    _
  $region3: #{_lambda_.11} parent=0 // pred_check_branch
    %9 = sbr.rel (0) target = $region5
  $region4: #{_lambda_.11} parent=0 // pred_region
    _
  $region5: #{_lambda_.11} parent=0 // pred_fallthru
    _
  // Predicated region
  $region6: #{_lambda_.11} parent=0 // pred_check
    _
  $region7: #{_lambda_.11} parent=0 // pred_check_branch
    %11 = sbr.rel (0) target = $region9
  $region8: #{_lambda_.11} parent=0 // pred_region
    _
  $region9: #{_lambda_.11} parent=0 // pred_fallthru
    _
  // Predicated region
  $region10: #{_lambda_.11} parent=0 // pred_check
    _
  $region11: #{_lambda_.11} parent=0 // pred_check_branch
    %13 = sbr.rel (0) target = $region13
  $region12: #{_lambda_.11} parent=0 // pred_region
    _
  $region13: #{_lambda_.11} parent=0 // pred_fallthru
    _
  %v15 = vld [vmem:[%s0] sm:$0xf]
  %v16 = vld [vmem:[%s0 + $0x4] sm:$0xf]
  %v17 = vld [vmem:[%s2] sm:$0xff]
  %v18 = vld [vmem:[%s2 + $0x8] sm:$0xf]
  %v19 = vld [vmem:[%s2 + $0xc] sm:$0xff]
  %v20 = vld [vmem:[%s2 + $0x14] sm:$0xf]
  %v21 = vld [vmem:[%s2 + $0x18] sm:$0xff]
  %v22 = vld [vmem:[%s2 + $0x20] sm:$0xf]
  %v23 = vld [vmem:[%s2 + $0x24] sm:$0xff]
  %v24 = vld [vmem:[%s2 + $0x2c] sm:$0xf]
  %v25 = vld [vmem:[%s2 + $0x30] sm:$0xff]
  %v26 = vld [vmem:[%s2 + $0x38] sm:$0xf]
  %v27 = vld [vmem:[%s2 + $0x3c] sm:$0xff]
  %v28 = vld [vmem:[%s2 + $0x44] sm:$0xf]
  %v29 = vld [vmem:[%s2 + $0x48] sm:$0xff]
  %v30 = vld [vmem:[%s2 + $0x50] sm:$0xf]
  %v31 = vld [vmem:[%s2 + $0x54] sm:$0xff]
  %v32 = vld [vmem:[%s2 + $0x5c] sm:$0xf]
  %v33 = vld [vmem:[%s2 + $0x60] sm:$0xff]
  %v34 = vld [vmem:[%s2 + $0x68] sm:$0xf]
  %v35 = vld [vmem:[%s2 + $0x6c] sm:$0xff]
  %v36 = vld [vmem:[%s2 + $0x74] sm:$0xf]
  %v37 = vld [vmem:[%s2 + $0x78] sm:$0xff]
  %v38 = vld [vmem:[%s2 + $0x80] sm:$0xf]
  %v39 = vld [vmem:[%s2 + $0x84] sm:$0xff]
  %v40 = vld [vmem:[%s2 + $0x8c] sm:$0xf]
  %v41 = vld [vmem:[%s1] sm:$0xff]
  %v42 = vld [vmem:[%s1 + $0x8] sm:$0xff]
  %44 = vset.pattern.permute.xlu0 0
  %45 = vperm.xlu0 %44, %v41
  %v46 = vpop.permute.xlu0 %45
  %49 = vset.pattern.permute.xlu0 0
  %50 = vperm.xlu0 %49, %v42
  %v51 = vpop.permute.xlu0 %50
  %v55 = vunpack.c.l.b16 %v15
  %v56 = vunpack.c.l.b16 %v16
  %v57 = vpack.c.b16 %v56, %v55
  %v82 = vunpack.c.l.b16 %v17
  %v83 = vunpack.c.h.b16 %v17
  %v84 = vunpack.c.l.b16 %v18
  %v85 = vunpack.c.l.b16 %v19
  %v86 = vunpack.c.h.b16 %v19
  %v87 = vunpack.c.l.b16 %v20
  %v88 = vunpack.c.l.b16 %v21
  %v89 = vunpack.c.h.b16 %v21
  %v90 = vunpack.c.l.b16 %v22
  %v91 = vunpack.c.l.b16 %v23
  %v92 = vunpack.c.h.b16 %v23
  %v93 = vunpack.c.l.b16 %v24
  %v94 = vunpack.c.l.b16 %v25
  %v95 = vunpack.c.h.b16 %v25
  %v96 = vunpack.c.l.b16 %v26
  %v97 = vunpack.c.l.b16 %v27
  %v98 = vunpack.c.h.b16 %v27
  %v99 = vunpack.c.l.b16 %v28
  %v100 = vunpack.c.l.b16 %v29
  %v101 = vunpack.c.h.b16 %v29
  %v102 = vunpack.c.l.b16 %v30
  %v103 = vunpack.c.l.b16 %v31
  %v104 = vunpack.c.h.b16 %v31
  %v105 = vunpack.c.l.b16 %v32
  %v106 = vunpack.c.l.b16 %v33
  %v107 = vunpack.c.h.b16 %v33
  %v108 = vunpack.c.l.b16 %v34
  %v109 = vunpack.c.l.b16 %v35
  %v110 = vunpack.c.h.b16 %v35
  %v111 = vunpack.c.l.b16 %v36
  %v112 = vunpack.c.l.b16 %v37
  %v113 = vunpack.c.h.b16 %v37
  %v114 = vunpack.c.l.b16 %v38
  %v115 = vunpack.c.l.b16 %v39
  %v116 = vunpack.c.h.b16 %v39
  %v117 = vunpack.c.l.b16 %v40
  %v118 = vpack.c.b16 %v85, %v82
  %v119 = vpack.c.b16 %v86, %v83
  %v120 = vpack.c.b16 %v87, %v84
  %v121 = vpack.c.b16 %v91, %v88
  %v122 = vpack.c.b16 %v92, %v89
  %v123 = vpack.c.b16 %v93, %v90
  %v124 = vpack.c.b16 %v97, %v94
  %v125 = vpack.c.b16 %v98, %v95
  %v126 = vpack.c.b16 %v99, %v96
  %v127 = vpack.c.b16 %v103, %v100
  %v128 = vpack.c.b16 %v104, %v101
  %v129 = vpack.c.b16 %v105, %v102
  %v130 = vpack.c.b16 %v109, %v106
  %v131 = vpack.c.b16 %v110, %v107
  %v132 = vpack.c.b16 %v111, %v108
  %v133 = vpack.c.b16 %v115, %v112
  %v134 = vpack.c.b16 %v116, %v113
  %v135 = vpack.c.b16 %v117, %v114
  %vm154 = vcmask 785408
  %v156 = vsel %vm154, %v57, 0
  %158 = vmatpush.bf16.msra.mxu0 0
  %159 = vmatpush.bf16.msra.mxu0 0
  %160 = vmatpush.bf16.msra.mxu0 %v133
  %161 = vmatpush.bf16.msra.mxu0 %v130
  %162 = vmatpush.bf16.msra.mxu0 %v127
  %163 = vmatpush.bf16.msra.mxu0 %v124
  %164 = vmatpush.bf16.msra.mxu0 %v121
  %165 = vmatpush.bf16.msra.mxu0 %v118
  %166 = vmatmul.bf16.gmra.mxu0 %v156
  %v167 = vpop.f32.mrf.mxu0
  %v168 = vadd.f32 %v46, %v167
  %v169 = vpop.f32.mrf.mxu0
  %v170 = vadd.f32 %v51, %v169
  %171 = vdwg.mxu0
  %172 = vmatpush.bf16.msra.mxu0 0
  %173 = vmatpush.bf16.msra.mxu0 0
  %174 = vmatpush.bf16.msra.mxu0 %v134
  %175 = vmatpush.bf16.msra.mxu0 %v131
  %176 = vmatpush.bf16.msra.mxu0 %v128
  %177 = vmatpush.bf16.msra.mxu0 %v125
  %178 = vmatpush.bf16.msra.mxu0 %v122
  %179 = vmatpush.bf16.msra.mxu0 %v119
  %180 = vmatmul.bf16.gmra.mxu0 %v156
  %v181 = vpop.f32.mrf.mxu0
  %v182 = vadd.f32 %v46, %v181
  %v183 = vpop.f32.mrf.mxu0
  %v184 = vadd.f32 %v51, %v183
  %185 = vdwg.mxu0
  %186 = vmatpush.bf16.msra.mxu0 0
  %187 = vmatpush.bf16.msra.mxu0 0
  %188 = vmatpush.bf16.msra.mxu0 %v135
  %189 = vmatpush.bf16.msra.mxu0 %v132
  %190 = vmatpush.bf16.msra.mxu0 %v129
  %191 = vmatpush.bf16.msra.mxu0 %v126
  %192 = vmatpush.bf16.msra.mxu0 %v123
  %193 = vmatpush.bf16.msra.mxu0 %v120
  %194 = vmatmul.bf16.gmra.mxu0 %v156
  %v195 = vpop.f32.mrf.mxu0
  %v196 = vadd.f32 %v46, %v195
  %v197 = vpop.f32.mrf.mxu0
  %v198 = vadd.f32 %v51, %v197
  %199 = vdwg.mxu0
  %v200 = vxor.u32 %v170, 2147483648
  %v201 = vxor.u32 %v184, 2147483648
  %v202 = vxor.u32 %v198, 2147483648
  %v203 = vmul.f32 %v200, 1.442695
  %v204 = vpow.pop %v203
  %v205 = vmul.f32 %v201, 1.442695
  %v206 = vpow.pop %v205
  %v207 = vmul.f32 %v202, 1.442695
  %v208 = vpow.pop %v207
  %v209 = vadd.f32 %v204, 1.0
  %v210 = vadd.f32 %v206, 1.0
  %v211 = vadd.f32 %v208, 1.0
  %v212 = vrcp.pop %v209
  %v213 = vmul.f32 %v209, %v212
  %v214 = vsub.f32 1.0, %v213
  %v215 = vmul.f32 %v212, %v214
  %v216 = vadd.f32 %v212, %v215
  %vm217 = vweird.f32 %v209
  %vm218 = vweird.f32 %v212
  %vm219 = vmor %vm217, %vm218
  %v220 = vsel %vm219, %v212, %v216
  %v221 = vand.u32 2147483647, %v209
  %vm222 = vcmp.eq.f32.partialorder %v221, 8.507059e+37
  %v223 = vand.u32 %v209, 2147483648
  %v224 = vor.u32 1.1754944e-38, %v223
  %v225 = vsel %vm222, %v224, %v220
  %v226 = vmul.f32 1.0, %v225
  %v227 = vrcp.pop %v210
  %v228 = vmul.f32 %v210, %v227
  %v229 = vsub.f32 1.0, %v228
  %v230 = vmul.f32 %v227, %v229
  %v231 = vadd.f32 %v227, %v230
  %vm232 = vweird.f32 %v210
  %vm233 = vweird.f32 %v227
  %vm234 = vmor %vm232, %vm233
  %v235 = vsel %vm234, %v227, %v231
  %v236 = vand.u32 2147483647, %v210
  %vm237 = vcmp.eq.f32.partialorder %v236, 8.507059e+37
  %v238 = vand.u32 %v210, 2147483648
  %v239 = vor.u32 1.1754944e-38, %v238
  %v240 = vsel %vm237, %v239, %v235
  %v241 = vmul.f32 1.0, %v240
  %v242 = vrcp.pop %v211
  %v243 = vmul.f32 %v211, %v242
  %v244 = vsub.f32 1.0, %v243
  %v245 = vmul.f32 %v242, %v244
  %v246 = vadd.f32 %v242, %v245
  %vm247 = vweird.f32 %v211
  %vm248 = vweird.f32 %v242
  %vm249 = vmor %vm247, %vm248
  %v250 = vsel %vm249, %v242, %v246
  %v251 = vand.u32 2147483647, %v211
  %vm252 = vcmp.eq.f32.partialorder %v251, 8.507059e+37
  %v253 = vand.u32 %v211, 2147483648
  %v254 = vor.u32 1.1754944e-38, %v253
  %v255 = vsel %vm252, %v254, %v250
  %v256 = vmul.f32 1.0, %v255
  %v257 = vmul.f32 %v226, %v168
  %v258 = vmul.f32 %v241, %v182
  %v259 = vmul.f32 %v256, %v196
  %v260 = vxor.u32 %v257, 2147483648
  %v261 = vxor.u32 %v258, 2147483648
  %v262 = vxor.u32 %v259, 2147483648
  %v263 = vmul.f32 %v260, 1.442695
  %v264 = vpow.pop %v263
  %v265 = vmul.f32 %v261, 1.442695
  %v266 = vpow.pop %v265
  %v267 = vmul.f32 %v262, 1.442695
  %v268 = vpow.pop %v267
  %v269 = vadd.f32 %v264, 1.0
  %v270 = vadd.f32 %v266, 1.0
  %v271 = vadd.f32 %v268, 1.0
  %v272 = vrcp.pop %v269
  %v273 = vmul.f32 %v269, %v272
  %v274 = vsub.f32 1.0, %v273
  %v275 = vmul.f32 %v272, %v274
  %v276 = vadd.f32 %v272, %v275
  %vm277 = vweird.f32 %v269
  %vm278 = vweird.f32 %v272
  %vm279 = vmor %vm277, %vm278
  %v280 = vsel %vm279, %v272, %v276
  %v281 = vand.u32 2147483647, %v269
  %vm282 = vcmp.eq.f32.partialorder %v281, 8.507059e+37
  %v283 = vand.u32 %v269, 2147483648
  %v284 = vor.u32 1.1754944e-38, %v283
  %v285 = vsel %vm282, %v284, %v280
  %v286 = vmul.f32 1.0, %v285
  %v287 = vrcp.pop %v270
  %v288 = vmul.f32 %v270, %v287
  %v289 = vsub.f32 1.0, %v288
  %v290 = vmul.f32 %v287, %v289
  %v291 = vadd.f32 %v287, %v290
  %vm292 = vweird.f32 %v270
  %vm293 = vweird.f32 %v287
  %vm294 = vmor %vm292, %vm293
  %v295 = vsel %vm294, %v287, %v291
  %v296 = vand.u32 2147483647, %v270
  %vm297 = vcmp.eq.f32.partialorder %v296, 8.507059e+37
  %v298 = vand.u32 %v270, 2147483648
  %v299 = vor.u32 1.1754944e-38, %v298
  %v300 = vsel %vm297, %v299, %v295
  %v301 = vmul.f32 1.0, %v300
  %v302 = vrcp.pop %v271
  %v303 = vmul.f32 %v271, %v302
  %v304 = vsub.f32 1.0, %v303
  %v305 = vmul.f32 %v302, %v304
  %v306 = vadd.f32 %v302, %v305
  %vm307 = vweird.f32 %v271
  %vm308 = vweird.f32 %v302
  %vm309 = vmor %vm307, %vm308
  %v310 = vsel %vm309, %v302, %v306
  %v311 = vand.u32 2147483647, %v271
  %vm312 = vcmp.eq.f32.partialorder %v311, 8.507059e+37
  %v313 = vand.u32 %v271, 2147483648
  %v314 = vor.u32 1.1754944e-38, %v313
  %v315 = vsel %vm312, %v314, %v310
  %v316 = vmul.f32 1.0, %v315
  %317 = vst [vmem:[%s3] sm:$0xff] %v286
  %318 = vst [vmem:[%s3 + $0x8] sm:$0xff] %v301
  %319 = vst [vmem:[%s3 + $0x10] sm:$0xff] %v316
  // Predicated region
  $region14: #{_lambda_.11} parent=0 // pred_check
    _
  $region15: #{_lambda_.11} parent=0 // pred_check_branch
    %321 = sbr.rel (0) target = $region17
  $region16: #{_lambda_.11} parent=0 // pred_region
    _
  $region17: #{_lambda_.11} parent=0 // pred_fallthru
    _
  // Predicated region
  $region18: #{_lambda_.11} parent=0 // pred_check
    _
  $region19: #{_lambda_.11} parent=0 // pred_check_branch
    %323 = sbr.rel (0) target = $region21
  $region20: #{_lambda_.11} parent=0 // pred_region
    _
  $region21: #{_lambda_.11} parent=0 // pred_fallthru
    _

</llo_original>
